<compile_context>
chip_gen: v7x
topology: tpu7x:2x2x1
jax: 0.10.0
libtpu: 0.0.40
codegen_flags: <defaults>
</compile_context>

<pallas_src>
import jax
import jax.numpy as jnp
from jax.experimental import pallas as pl
from jax.experimental.pallas import tpu as pltpu

TILE_B = 512   # batch tile: multiple of 256 (v6e/v7x MXU) and 128 (v5e MXU)
K_PAD = 128    # 120 input features padded to one full 128-lane tile


def _mlp_kernel(x_ref, w1_ref, b1_ref, w2_ref, b2_ref, w3_ref, b3_ref, o_ref):
    # fc1: (TILE_B,128)bf16 @ (128,64)bf16 -> f32 accumulate, bias + relu in f32
    h1 = jnp.dot(x_ref[...], w1_ref[...], preferred_element_type=jnp.float32)
    h1 = jnp.maximum(h1 + b1_ref[...], 0.0)
    # fc2: (TILE_B,64)bf16 @ (64,32)bf16 -> f32 accumulate, bias + relu in f32
    h2 = jnp.dot(h1.astype(jnp.bfloat16), w2_ref[...],
                 preferred_element_type=jnp.float32)
    h2 = jnp.maximum(h2 + b2_ref[...], 0.0)
    # fc3: N=1 output column -> VPU multiply + lane reduce instead of the MXU.
    h3 = jnp.sum(h2 * w3_ref[...], axis=-1, keepdims=True) + b3_ref[...]
    o_ref[...] = h3.astype(o_ref.dtype)


def mlp_forward(x, w1, b1, w2, b2, w3, b3, *, tile_b=TILE_B):
    """x: (B, 120) f32 -> (B, 1) f32.  Weights in (in, out) layout."""
    B, F = x.shape
    assert F == 120
    n_tiles = pl.cdiv(B, tile_b)
    Bp = n_tiles * tile_b

    # Host-side layout plumbing (ideally the caller ships x as bf16 already):
    # pad K 120->128 and batch to a tile multiple, stream x/W1/W2 as bf16.
    x_p = jnp.pad(x, ((0, Bp - B), (0, K_PAD - F))).astype(jnp.bfloat16)
    w1_p = jnp.pad(w1, ((0, K_PAD - F), (0, 0))).astype(jnp.bfloat16)
    w2_p = w2.astype(jnp.bfloat16)
    w3_row = w3.reshape(1, 32).astype(jnp.float32)
    b1_p = b1.reshape(1, 64).astype(jnp.float32)
    b2_p = b2.reshape(1, 32).astype(jnp.float32)
    b3_p = b3.reshape(1, 1).astype(jnp.float32)

    # Constant index_map -> weights/biases stay resident across grid steps.
    const = lambda shape: pl.BlockSpec(shape, lambda i: (0,) * len(shape))

    out = pl.pallas_call(
        _mlp_kernel,
        out_shape=jax.ShapeDtypeStruct((Bp, 1), jnp.float32),
        grid=(n_tiles,),
        in_specs=[
            pl.BlockSpec((tile_b, K_PAD), lambda i: (i, 0)),   # x stream
            const(w1_p.shape), const(b1_p.shape),
            const(w2_p.shape), const(b2_p.shape),
            const(w3_row.shape), const(b3_p.shape),
        ],
        out_specs=pl.BlockSpec((tile_b, 1), lambda i: (i, 0)),
        compiler_params=pltpu.CompilerParams(
            dimension_semantics=("parallel",)),
    )(x_p, w1_p, b1_p, w2_p, b2_p, w3_row, b3_p)
    return out[:B]


def init_params(key):
    """Deterministic init mimicking torch.nn.Linear (uniform +/- 1/sqrt(fan_in)).
    Weights are stored as (in_features, out_features)."""
    dims = [(120, 64), (64, 32), (32, 1)]
    params = []
    for i, (fin, fout) in enumerate(dims):
        kw, kb = jax.random.split(jax.random.fold_in(key, i))
        bound = 1.0 / jnp.sqrt(jnp.float32(fin))
        w = jax.random.uniform(kw, (fin, fout), jnp.float32, -bound, bound)
        b = jax.random.uniform(kb, (1, fout), jnp.float32, -bound, bound)
        params.extend([w, b])
    return params


if __name__ == "__main__":
    key = jax.random.PRNGKey(0)
    kx, kp = jax.random.split(key)

    batch = 8
    x = jax.random.normal(kx, (batch, 120), dtype=jnp.float32)
    w1, b1, w2, b2, w3, b3 = init_params(kp)

    out = mlp_forward(x, w1, b1, w2, b2, w3, b3)
    out = jax.block_until_ready(out)
    assert out.shape == (batch, 1)

    # Reference with the same bf16-input / f32-accumulate recipe (tight check).
    h1 = jnp.maximum(
        jnp.dot(x.astype(jnp.bfloat16), w1.astype(jnp.bfloat16),
                preferred_element_type=jnp.float32) + b1, 0.0)
    h2 = jnp.maximum(
        jnp.dot(h1.astype(jnp.bfloat16), w2.astype(jnp.bfloat16),
                preferred_element_type=jnp.float32) + b2, 0.0)
    ref_bf16 = h2 @ w3 + b3
    assert jnp.allclose(out, ref_bf16, atol=1e-3, rtol=1e-3)

    # Pure-f32 reference (loose check: bf16 input rounding vs f32 math).
    ref32 = jnp.maximum(x @ w1 + b1, 0.0)
    ref32 = jnp.maximum(ref32 @ w2 + b2, 0.0)
    ref32 = ref32 @ w3 + b3
    assert jnp.allclose(out, ref32, atol=3e-2, rtol=3e-2)

    print("KERNEL_OK")
</pallas_src>

<mosaic_0001>
module attributes {stable_mosaic.version = 11 : i64} {
  func.func @_mlp_kernel(%arg0: i32, %arg1: memref<512x128xbf16, #tpu.memory_space<vmem>>, %arg2: memref<128x64xbf16, #tpu.memory_space<vmem>>, %arg3: memref<1x64xf32, #tpu.memory_space<vmem>>, %arg4: memref<64x32xbf16, #tpu.memory_space<vmem>>, %arg5: memref<1x32xf32, #tpu.memory_space<vmem>>, %arg6: memref<1x32xf32, #tpu.memory_space<vmem>>, %arg7: memref<1x1xf32, #tpu.memory_space<vmem>>, %arg8: memref<512x1xf32, #tpu.memory_space<vmem>>) attributes {dimension_semantics = [#tpu.dimension_semantics<parallel>], iteration_bounds = array<i64: 1>, scalar_prefetch = 0 : i64, scratch_operands = 0 : i64, tpu.core_type = #tpu.core_type<tc>, window_params = [{transform_indices = @transform_0, window_bounds = array<i64: 512, 128>}, {pipeline_mode = #tpu.pipeline_mode<synchronous>, transform_indices = @transform_1, window_bounds = array<i64: 128, 64>}, {pipeline_mode = #tpu.pipeline_mode<synchronous>, transform_indices = @transform_2, window_bounds = array<i64: 1, 64>}, {pipeline_mode = #tpu.pipeline_mode<synchronous>, transform_indices = @transform_3, window_bounds = array<i64: 64, 32>}, {pipeline_mode = #tpu.pipeline_mode<synchronous>, transform_indices = @transform_4, window_bounds = array<i64: 1, 32>}, {pipeline_mode = #tpu.pipeline_mode<synchronous>, transform_indices = @transform_5, window_bounds = array<i64: 1, 32>}, {pipeline_mode = #tpu.pipeline_mode<synchronous>, transform_indices = @transform_6, window_bounds = array<i64: 1, 1>}, {transform_indices = @transform_7, window_bounds = array<i64: 512, 1>}]} {
    %c0 = arith.constant 0 : index
    %c0_0 = arith.constant 0 : index
    %0 = vector.load %arg1[%c0, %c0_0] : memref<512x128xbf16, #tpu.memory_space<vmem>>, vector<512x128xbf16>
    %c0_1 = arith.constant 0 : index
    %c0_2 = arith.constant 0 : index
    %1 = vector.load %arg2[%c0_1, %c0_2] : memref<128x64xbf16, #tpu.memory_space<vmem>>, vector<128x64xbf16>
    %cst = arith.constant dense<0.000000e+00> : vector<512x64xf32>
    %2 = tpu.matmul %0, %1, %cst {dimension_numbers = #tpu.dot_dimension_numbers<[1], [0], [0], [1], [0, 0, 1, 1], [], []>} : vector<512x128xbf16>, vector<128x64xbf16>, vector<512x64xf32> -> vector<512x64xf32>
    %c0_3 = arith.constant 0 : index
    %c0_4 = arith.constant 0 : index
    %3 = vector.load %arg3[%c0_3, %c0_4] : memref<1x64xf32, #tpu.memory_space<vmem>>, vector<1x64xf32>
    %4 = vector.broadcast %3 : vector<1x64xf32> to vector<512x64xf32>
    %5 = arith.addf %2, %4 : vector<512x64xf32>
    %cst_5 = arith.constant 0.000000e+00 : f32
    %6 = vector.broadcast %cst_5 : f32 to vector<512x64xf32>
    %7 = arith.maximumf %5, %6 : vector<512x64xf32>
    %8 = arith.truncf %7 : vector<512x64xf32> to vector<512x64xbf16>
    %c0_6 = arith.constant 0 : index
    %c0_7 = arith.constant 0 : index
    %9 = vector.load %arg4[%c0_6, %c0_7] : memref<64x32xbf16, #tpu.memory_space<vmem>>, vector<64x32xbf16>
    %cst_8 = arith.constant dense<0.000000e+00> : vector<512x32xf32>
    %10 = tpu.matmul %8, %9, %cst_8 {dimension_numbers = #tpu.dot_dimension_numbers<[1], [0], [0], [1], [0, 0, 1, 1], [], []>} : vector<512x64xbf16>, vector<64x32xbf16>, vector<512x32xf32> -> vector<512x32xf32>
    %c0_9 = arith.constant 0 : index
    %c0_10 = arith.constant 0 : index
    %11 = vector.load %arg5[%c0_9, %c0_10] : memref<1x32xf32, #tpu.memory_space<vmem>>, vector<1x32xf32>
    %12 = vector.broadcast %11 : vector<1x32xf32> to vector<512x32xf32>
    %13 = arith.addf %10, %12 : vector<512x32xf32>
    %cst_11 = arith.constant 0.000000e+00 : f32
    %14 = vector.broadcast %cst_11 : f32 to vector<512x32xf32>
    %15 = arith.maximumf %13, %14 : vector<512x32xf32>
    %c0_12 = arith.constant 0 : index
    %c0_13 = arith.constant 0 : index
    %16 = vector.load %arg6[%c0_12, %c0_13] : memref<1x32xf32, #tpu.memory_space<vmem>>, vector<1x32xf32>
    %17 = vector.broadcast %16 : vector<1x32xf32> to vector<512x32xf32>
    %18 = arith.mulf %15, %17 : vector<512x32xf32>
    %cst_14 = arith.constant dense<0.000000e+00> : vector<512xf32>
    %19 = vector.multi_reduction <add>, %18, %cst_14 [1] : vector<512x32xf32> to vector<512xf32>
    %20 = vector.shape_cast %19 : vector<512xf32> to vector<512x1xf32>
    %c0_15 = arith.constant 0 : index
    %c0_16 = arith.constant 0 : index
    %21 = vector.load %arg7[%c0_15, %c0_16] : memref<1x1xf32, #tpu.memory_space<vmem>>, vector<1x1xf32>
    %22 = vector.broadcast %21 : vector<1x1xf32> to vector<512x1xf32>
    %23 = arith.addf %20, %22 : vector<512x1xf32>
    %c0_17 = arith.constant 0 : index
    %c0_18 = arith.constant 0 : index
    %24 = vector.load %arg8[%c0_17, %c0_18] : memref<512x1xf32, #tpu.memory_space<vmem>>, vector<512x1xf32>
    tpu.vector_store %arg8[%c0_17, %c0_18], %23 {strides = array<i32>} : memref<512x1xf32, #tpu.memory_space<vmem>>, vector<512x1xf32>,
    return
  }
  func.func @transform_0(%arg0: i32) -> (i32, i32) {
    %c0_i32 = arith.constant 0 : i32
    %c0_i32_0 = arith.constant 0 : i32
    return %arg0, %c0_i32 : i32, i32
  }
  func.func @transform_1(%arg0: i32) -> (i32, i32) {
    %c0_i32 = arith.constant 0 : i32
    %c0_i32_0 = arith.constant 0 : i32
    %c0_i32_1 = arith.constant 0 : i32
    return %c0_i32, %c0_i32_0 : i32, i32
  }
  func.func @transform_2(%arg0: i32) -> (i32, i32) {
    %c0_i32 = arith.constant 0 : i32
    %c0_i32_0 = arith.constant 0 : i32
    %c0_i32_1 = arith.constant 0 : i32
    return %c0_i32, %c0_i32_0 : i32, i32
  }
  func.func @transform_3(%arg0: i32) -> (i32, i32) {
    %c0_i32 = arith.constant 0 : i32
    %c0_i32_0 = arith.constant 0 : i32
    %c0_i32_1 = arith.constant 0 : i32
    return %c0_i32, %c0_i32_0 : i32, i32
  }
  func.func @transform_4(%arg0: i32) -> (i32, i32) {
    %c0_i32 = arith.constant 0 : i32
    %c0_i32_0 = arith.constant 0 : i32
    %c0_i32_1 = arith.constant 0 : i32
    return %c0_i32, %c0_i32_0 : i32, i32
  }
  func.func @transform_5(%arg0: i32) -> (i32, i32) {
    %c0_i32 = arith.constant 0 : i32
    %c0_i32_0 = arith.constant 0 : i32
    %c0_i32_1 = arith.constant 0 : i32
    return %c0_i32, %c0_i32_0 : i32, i32
  }
  func.func @transform_6(%arg0: i32) -> (i32, i32) {
    %c0_i32 = arith.constant 0 : i32
    %c0_i32_0 = arith.constant 0 : i32
    %c0_i32_1 = arith.constant 0 : i32
    return %c0_i32, %c0_i32_0 : i32, i32
  }
  func.func @transform_7(%arg0: i32) -> (i32, i32) {
    %c0_i32 = arith.constant 0 : i32
    %c0_i32_0 = arith.constant 0 : i32
    return %arg0, %c0_i32 : i32, i32
  }
}

</mosaic_0001>

<llo_original>
// kernel: tpu_custom_call.1
$region0: #{tpu_custom_call.1}
  #allocation0 [shape = 'u32[]', space=smem, size = 0x4, offset = 0x4, fixed_abs, tag = 'smem constant byte address 0x4 - core index']
  #allocation1 [shape = 'u32[144,128]{1,0:T(1,128)}', space=vmem, size = 0x12000, scoped, tag = 'internal scratch']
  #allocation2 [shape = 'f32[1,1]{1,0:T(1,128)S(1)}', space=vmem, size = 0x200, scoped, tag = 'scoped memory for tpu_custom_call.1']
  %s0 = inlined_call_operand.hbm [shape: bf16[512,128], index: 0, kind: input, shape index: {}]
  %s1 = inlined_call_operand.vmem [shape: bf16[128,64], index: 1, kind: input, shape index: {}]
  %s2 = inlined_call_operand.vmem [shape: f32[1,64], index: 2, kind: input, shape index: {}]
  %s3 = inlined_call_operand.vmem [shape: bf16[64,32], index: 3, kind: input, shape index: {}]
  %s4 = inlined_call_operand.vmem [shape: f32[1,32], index: 4, kind: input, shape index: {}]
  %s5 = inlined_call_operand.vmem [shape: f32[1,32], index: 5, kind: input, shape index: {}]
  %s6 = inlined_call_operand.<no memory space> [shape: f32[1,1], index: 6, kind: input, shape index: {}]
  %s7 = inlined_call_operand.vmem [shape: f32[512,1], index: 7, kind: output, shape index: {}]
  %s8 = sld [smem:[#allocation0]]
  $region42: #{tpu_custom_call.1} parent=0
    _
  %s10 = ssub.s32 1, %s8
  %s11 = scalar_select 0, %s10, %s8
  %v12 = vstv %s6
  %13 = vst [vmem:[#allocation2] sm:$0x1] %v12
  $region1: #{tpu_custom_call.1} parent=0
    #allocation3 [shape = 'u8[131072]{0}', space=vmem, size = 0x20000, scoped, tag = 'input window, operand 0, single buffered']
    #allocation4 [shape = 's32[1]{0}', space=sflag, size = 0x4, scoped, tag = 'scoped memory for tpu_custom_call.1']
    %14 = vsyncpa [#allocation4], 0
    // Predicated region
    $region2: #{tpu_custom_call.1} parent=1 // pred_check
      _
    $region3: #{tpu_custom_call.1} parent=1 // pred_check_branch
      %16 = sbr.rel (0) target = $region5
    $region4: #{tpu_custom_call.1} parent=1 // pred_region
      %s18 = ssub.s32 4096, 4096
      %19 = vsyncadd [#allocation4], %s18
      %s20 = sshll.u32 [#allocation3], 4
      %s21 = int_to_ptr.vmem [resolvable:$true] %s20
      %26 = dma.hbm_to_vmem [thread:$0]  %s0, 4096, %s21, [#allocation4], 64, 64, 4
    $region5: #{tpu_custom_call.1} parent=1 // pred_fallthru
      _
    // Predicated region
    $region6: #{tpu_custom_call.1} parent=1 // pred_check
      _
    $region7: #{tpu_custom_call.1} parent=1 // pred_check_branch
      %28 = sbr.rel (0) target = $region9
    $region8: #{tpu_custom_call.1} parent=1 // pred_region
      _
    $region9: #{tpu_custom_call.1} parent=1 // pred_fallthru
      _
    // Predicated region
    $region10: #{tpu_custom_call.1} parent=1 // pred_check
      _
    $region11: #{tpu_custom_call.1} parent=1 // pred_check_branch
      %30 = sbr.rel (0) target = $region13
    $region12: #{tpu_custom_call.1} parent=1 // pred_region
      _
    $region13: #{tpu_custom_call.1} parent=1 // pred_fallthru
      _
    // Predicated region
    $region14: #{tpu_custom_call.1} parent=1 // pred_check
      _
    $region15: #{tpu_custom_call.1} parent=1 // pred_check_branch
      %32 = sbr.rel (0) target = $region17
    $region16: #{tpu_custom_call.1} parent=1 // pred_region
      _
    $region17: #{tpu_custom_call.1} parent=1 // pred_fallthru
      _
    // Predicated region
    $region18: #{tpu_custom_call.1} parent=1 // pred_check
      _
    $region19: #{tpu_custom_call.1} parent=1 // pred_check_branch
      %34 = sbr.rel (0) target = $region21
    $region20: #{tpu_custom_call.1} parent=1 // pred_region
      _
    $region21: #{tpu_custom_call.1} parent=1 // pred_fallthru
      _
    // Predicated region
    $region22: #{tpu_custom_call.1} parent=1 // pred_check
      _
    $region23: #{tpu_custom_call.1} parent=1 // pred_check_branch
      %36 = sbr.rel (0) target = $region25
    $region24: #{tpu_custom_call.1} parent=1 // pred_region
      _
    $region25: #{tpu_custom_call.1} parent=1 // pred_fallthru
      _
    // Predicated region
    $region26: #{tpu_custom_call.1} parent=1 // pred_check
      _
    $region27: #{tpu_custom_call.1} parent=1 // pred_check_branch
      %38 = sbr.rel (0) target = $region29
    $region28: #{tpu_custom_call.1} parent=1 // pred_region
      _
    $region29: #{tpu_custom_call.1} parent=1 // pred_fallthru
      _
    // Predicated region
    $region30: #{tpu_custom_call.1} parent=1 // pred_check
      _
    $region31: #{tpu_custom_call.1} parent=1 // pred_check_branch
      %40 = sbr.rel (0) target = $region33
    $region32: #{tpu_custom_call.1} parent=1 // pred_region
      %41 = dma.done [#allocation4], 4096
    $region33: #{tpu_custom_call.1} parent=1 // pred_fallthru
      _
    %v43 = vld [vmem:[#allocation3] sm:$0xf]
    %v44 = vld [vmem:[#allocation3 + $0x4] sm:$0xf]
    %v45 = vld [vmem:[#allocation3 + $0x8] sm:$0xf]
    %v46 = vld [vmem:[#allocation3 + $0xc] sm:$0xf]
    %v47 = vld [vmem:[#allocation3 + $0x10] sm:$0xf]
    %v48 = vld [vmem:[#allocation3 + $0x14] sm:$0xf]
    %v49 = vld [vmem:[#allocation3 + $0x18] sm:$0xf]
    %v50 = vld [vmem:[#allocation3 + $0x1c] sm:$0xf]
    %v51 = vld [vmem:[#allocation3 + $0x20] sm:$0xf]
    %v52 = vld [vmem:[#allocation3 + $0x24] sm:$0xf]
    %v53 = vld [vmem:[#allocation3 + $0x28] sm:$0xf]
    %v54 = vld [vmem:[#allocation3 + $0x2c] sm:$0xf]
    %v55 = vld [vmem:[#allocation3 + $0x30] sm:$0xf]
    %v56 = vld [vmem:[#allocation3 + $0x34] sm:$0xf]
    %v57 = vld [vmem:[#allocation3 + $0x38] sm:$0xf]
    %v58 = vld [vmem:[#allocation3 + $0x3c] sm:$0xf]
    %v59 = vld [vmem:[#allocation3 + $0x40] sm:$0xf]
    %v60 = vld [vmem:[#allocation3 + $0x44] sm:$0xf]
    %v61 = vld [vmem:[#allocation3 + $0x48] sm:$0xf]
    %v62 = vld [vmem:[#allocation3 + $0x4c] sm:$0xf]
    %v63 = vld [vmem:[#allocation3 + $0x50] sm:$0xf]
    %v64 = vld [vmem:[#allocation3 + $0x54] sm:$0xf]
    %v65 = vld [vmem:[#allocation3 + $0x58] sm:$0xf]
    %v66 = vld [vmem:[#allocation3 + $0x5c] sm:$0xf]
    %v67 = vld [vmem:[#allocation3 + $0x60] sm:$0xf]
    %v68 = vld [vmem:[#allocation3 + $0x64] sm:$0xf]
    %v69 = vld [vmem:[#allocation3 + $0x68] sm:$0xf]
    %v70 = vld [vmem:[#allocation3 + $0x6c] sm:$0xf]
    %v71 = vld [vmem:[#allocation3 + $0x70] sm:$0xf]
    %v72 = vld [vmem:[#allocation3 + $0x74] sm:$0xf]
    %v73 = vld [vmem:[#allocation3 + $0x78] sm:$0xf]
    %v74 = vld [vmem:[#allocation3 + $0x7c] sm:$0xf]
    %v75 = vld [vmem:[#allocation3 + $0x80] sm:$0xf]
    %v76 = vld [vmem:[#allocation3 + $0x84] sm:$0xf]
    %v77 = vld [vmem:[#allocation3 + $0x88] sm:$0xf]
    %v78 = vld [vmem:[#allocation3 + $0x8c] sm:$0xf]
    %v79 = vld [vmem:[#allocation3 + $0x90] sm:$0xf]
    %v80 = vld [vmem:[#allocation3 + $0x94] sm:$0xf]
    %v81 = vld [vmem:[#allocation3 + $0x98] sm:$0xf]
    %v82 = vld [vmem:[#allocation3 + $0x9c] sm:$0xf]
    %v83 = vld [vmem:[#allocation3 + $0xa0] sm:$0xf]
    %v84 = vld [vmem:[#allocation3 + $0xa4] sm:$0xf]
    %v85 = vld [vmem:[#allocation3 + $0xa8] sm:$0xf]
    %v86 = vld [vmem:[#allocation3 + $0xac] sm:$0xf]
    %v87 = vld [vmem:[#allocation3 + $0xb0] sm:$0xf]
    %v88 = vld [vmem:[#allocation3 + $0xb4] sm:$0xf]
    %v89 = vld [vmem:[#allocation3 + $0xb8] sm:$0xf]
    %v90 = vld [vmem:[#allocation3 + $0xbc] sm:$0xf]
    %v91 = vld [vmem:[#allocation3 + $0xc0] sm:$0xf]
    %v92 = vld [vmem:[#allocation3 + $0xc4] sm:$0xf]
    %v93 = vld [vmem:[#allocation3 + $0xc8] sm:$0xf]
    %v94 = vld [vmem:[#allocation3 + $0xcc] sm:$0xf]
    %v95 = vld [vmem:[#allocation3 + $0xd0] sm:$0xf]
    %v96 = vld [vmem:[#allocation3 + $0xd4] sm:$0xf]
    %v97 = vld [vmem:[#allocation3 + $0xd8] sm:$0xf]
    %v98 = vld [vmem:[#allocation3 + $0xdc] sm:$0xf]
    %v99 = vld [vmem:[#allocation3 + $0xe0] sm:$0xf]
    %v100 = vld [vmem:[#allocation3 + $0xe4] sm:$0xf]
    %v101 = vld [vmem:[#allocation3 + $0xe8] sm:$0xf]
    %v102 = vld [vmem:[#allocation3 + $0xec] sm:$0xf]
    %v103 = vld [vmem:[#allocation3 + $0xf0] sm:$0xf]
    %v104 = vld [vmem:[#allocation3 + $0xf4] sm:$0xf]
    %v105 = vld [vmem:[#allocation3 + $0xf8] sm:$0xf]
    %v106 = vld [vmem:[#allocation3 + $0xfc] sm:$0xf]
    %v107 = vld [vmem:[%s1] sm:$0xf]
    %v108 = vld [vmem:[%s1 + $0x4] sm:$0xf]
    %v109 = vld [vmem:[%s1 + $0x8] sm:$0xf]
    %v110 = vld [vmem:[%s1 + $0xc] sm:$0xf]
    %v111 = vld [vmem:[%s1 + $0x10] sm:$0xf]
    %v112 = vld [vmem:[%s1 + $0x14] sm:$0xf]
    %v113 = vld [vmem:[%s1 + $0x18] sm:$0xf]
    %v114 = vld [vmem:[%s1 + $0x1c] sm:$0xf]
    %v115 = vld [vmem:[%s1 + $0x20] sm:$0xf]
    %v116 = vld [vmem:[%s1 + $0x24] sm:$0xf]
    %v117 = vld [vmem:[%s1 + $0x28] sm:$0xf]
    %v118 = vld [vmem:[%s1 + $0x2c] sm:$0xf]
    %v119 = vld [vmem:[%s1 + $0x30] sm:$0xf]
    %v120 = vld [vmem:[%s1 + $0x34] sm:$0xf]
    %v121 = vld [vmem:[%s1 + $0x38] sm:$0xf]
    %v122 = vld [vmem:[%s1 + $0x3c] sm:$0xf]
    %v123 = vld [vmem:[%s2] sm:$0x1]
    %v125 = vlaneseq
    %v126 = vshrl.u32 %v125, 7
    %v127 = vsub.s32 0, %v126
    %v128 = vrot.slane %v123, %v127
    %v194 = vunpack.c.l.b16 %v43
    %v195 = vunpack.c.l.b16 %v44
    %v196 = vunpack.c.l.b16 %v45
    %v197 = vunpack.c.l.b16 %v46
    %v198 = vunpack.c.l.b16 %v47
    %v199 = vunpack.c.l.b16 %v48
    %v200 = vunpack.c.l.b16 %v49
    %v201 = vunpack.c.l.b16 %v50
    %v202 = vunpack.c.l.b16 %v51
    %v203 = vunpack.c.l.b16 %v52
    %v204 = vunpack.c.l.b16 %v53
    %v205 = vunpack.c.l.b16 %v54
    %v206 = vunpack.c.l.b16 %v55
    %v207 = vunpack.c.l.b16 %v56
    %v208 = vunpack.c.l.b16 %v57
    %v209 = vunpack.c.l.b16 %v58
    %v210 = vunpack.c.l.b16 %v59
    %v211 = vunpack.c.l.b16 %v60
    %v212 = vunpack.c.l.b16 %v61
    %v213 = vunpack.c.l.b16 %v62
    %v214 = vunpack.c.l.b16 %v63
    %v215 = vunpack.c.l.b16 %v64
    %v216 = vunpack.c.l.b16 %v65
    %v217 = vunpack.c.l.b16 %v66
    %v218 = vunpack.c.l.b16 %v67
    %v219 = vunpack.c.l.b16 %v68
    %v220 = vunpack.c.l.b16 %v69
    %v221 = vunpack.c.l.b16 %v70
    %v222 = vunpack.c.l.b16 %v71
    %v223 = vunpack.c.l.b16 %v72
    %v224 = vunpack.c.l.b16 %v73
    %v225 = vunpack.c.l.b16 %v74
    %v226 = vunpack.c.l.b16 %v75
    %v227 = vunpack.c.l.b16 %v76
    %v228 = vunpack.c.l.b16 %v77
    %v229 = vunpack.c.l.b16 %v78
    %v230 = vunpack.c.l.b16 %v79
    %v231 = vunpack.c.l.b16 %v80
    %v232 = vunpack.c.l.b16 %v81
    %v233 = vunpack.c.l.b16 %v82
    %v234 = vunpack.c.l.b16 %v83
    %v235 = vunpack.c.l.b16 %v84
    %v236 = vunpack.c.l.b16 %v85
    %v237 = vunpack.c.l.b16 %v86
    %v238 = vunpack.c.l.b16 %v87
    %v239 = vunpack.c.l.b16 %v88
    %v240 = vunpack.c.l.b16 %v89
    %v241 = vunpack.c.l.b16 %v90
    %v242 = vunpack.c.l.b16 %v91
    %v243 = vunpack.c.l.b16 %v92
    %v244 = vunpack.c.l.b16 %v93
    %v245 = vunpack.c.l.b16 %v94
    %v246 = vunpack.c.l.b16 %v95
    %v247 = vunpack.c.l.b16 %v96
    %v248 = vunpack.c.l.b16 %v97
    %v249 = vunpack.c.l.b16 %v98
    %v250 = vunpack.c.l.b16 %v99
    %v251 = vunpack.c.l.b16 %v100
    %v252 = vunpack.c.l.b16 %v101
    %v253 = vunpack.c.l.b16 %v102
    %v254 = vunpack.c.l.b16 %v103
    %v255 = vunpack.c.l.b16 %v104
    %v256 = vunpack.c.l.b16 %v105
    %v257 = vunpack.c.l.b16 %v106
    %v258 = vpack.c.b16 %v195, %v194
    %v259 = vpack.c.b16 %v197, %v196
    %v260 = vpack.c.b16 %v199, %v198
    %v261 = vpack.c.b16 %v201, %v200
    %v262 = vpack.c.b16 %v203, %v202
    %v263 = vpack.c.b16 %v205, %v204
    %v264 = vpack.c.b16 %v207, %v206
    %v265 = vpack.c.b16 %v209, %v208
    %v266 = vpack.c.b16 %v211, %v210
    %v267 = vpack.c.b16 %v213, %v212
    %v268 = vpack.c.b16 %v215, %v214
    %v269 = vpack.c.b16 %v217, %v216
    %v270 = vpack.c.b16 %v219, %v218
    %v271 = vpack.c.b16 %v221, %v220
    %v272 = vpack.c.b16 %v223, %v222
    %v273 = vpack.c.b16 %v225, %v224
    %v274 = vpack.c.b16 %v227, %v226
    %v275 = vpack.c.b16 %v229, %v228
    %v276 = vpack.c.b16 %v231, %v230
    %v277 = vpack.c.b16 %v233, %v232
    %v278 = vpack.c.b16 %v235, %v234
    %v279 = vpack.c.b16 %v237, %v236
    %v280 = vpack.c.b16 %v239, %v238
    %v281 = vpack.c.b16 %v241, %v240
    %v282 = vpack.c.b16 %v243, %v242
    %v283 = vpack.c.b16 %v245, %v244
    %v284 = vpack.c.b16 %v247, %v246
    %v285 = vpack.c.b16 %v249, %v248
    %v286 = vpack.c.b16 %v251, %v250
    %v287 = vpack.c.b16 %v253, %v252
    %v288 = vpack.c.b16 %v255, %v254
    %v289 = vpack.c.b16 %v257, %v256
    %v338 = vunpack.c.l.b16 %v107
    %v339 = vunpack.c.l.b16 %v108
    %v340 = vunpack.c.l.b16 %v109
    %v341 = vunpack.c.l.b16 %v110
    %v342 = vunpack.c.l.b16 %v111
    %v343 = vunpack.c.l.b16 %v112
    %v344 = vunpack.c.l.b16 %v113
    %v345 = vunpack.c.l.b16 %v114
    %v346 = vunpack.c.l.b16 %v115
    %v347 = vunpack.c.l.b16 %v116
    %v348 = vunpack.c.l.b16 %v117
    %v349 = vunpack.c.l.b16 %v118
    %v350 = vunpack.c.l.b16 %v119
    %v351 = vunpack.c.l.b16 %v120
    %v352 = vunpack.c.l.b16 %v121
    %v353 = vunpack.c.l.b16 %v122
    %v354 = vpack.c.b16 %v339, %v338
    %v355 = vpack.c.b16 %v341, %v340
    %v356 = vpack.c.b16 %v343, %v342
    %v357 = vpack.c.b16 %v345, %v344
    %v358 = vpack.c.b16 %v347, %v346
    %v359 = vpack.c.b16 %v349, %v348
    %v360 = vpack.c.b16 %v351, %v350
    %v361 = vpack.c.b16 %v353, %v352
    %370 = vmatprep.subr.bf16.mxu0 0
    %371 = vmatpush1.bf16.msra.mxu0 %v354
    %372 = vmatprep.subr.bf16.mxu0 0
    %373 = vmatpush1.bf16.msra.mxu0 %v355
    %374 = vmatprep.subr.bf16.mxu0 0
    %375 = vmatpush1.bf16.msra.mxu0 %v356
    %376 = vmatprep.subr.bf16.mxu0 0
    %377 = vmatpush1.bf16.msra.mxu0 %v357
    %378 = vmatprep.subr.bf16.mxu0 0
    %379 = vmatpush1.bf16.msra.mxu0 %v358
    %380 = vmatprep.subr.bf16.mxu0 0
    %381 = vmatpush1.bf16.msra.mxu0 %v359
    %382 = vmatprep.subr.bf16.mxu0 0
    %383 = vmatpush1.bf16.msra.mxu0 %v360
    %384 = vmatprep.subr.bf16.mxu0 0
    %385 = vmatpush1.bf16.msra.mxu0 %v361
    %386 = vmatprep.subr.bf16.mxu0 0
    %387 = vmatpush1.bf16.msra.mxu0 0
    %388 = vmatprep.subr.bf16.mxu0 0
    %389 = vmatpush1.bf16.msra.mxu0 0
    %390 = vmatprep.subr.bf16.mxu0 0
    %391 = vmatpush1.bf16.msra.mxu0 0
    %392 = vmatprep.subr.bf16.mxu0 0
    %393 = vmatpush1.bf16.msra.mxu0 0
    %394 = vmatprep.subr.bf16.mxu0 0
    %395 = vmatpush1.bf16.msra.mxu0 0
    %396 = vmatprep.subr.bf16.mxu0 0
    %397 = vmatpush1.bf16.msra.mxu0 0
    %398 = vmatprep.subr.bf16.mxu0 0
    %399 = vmatpush1.bf16.msra.mxu0 0
    %400 = vmatprep.subr.bf16.mxu0 0
    %401 = vmatpush1.bf16.msra.mxu0 0
    %402 = vmatprep.mubr.bf16.mxu0 0
    %403 = vmatmul.mubr.bf16.gmra.mrb[0].mxu0 %v258
    %v404 = vpop.f32.mrb[0].mxu0
    %v405 = vadd.f32 %v128, %v404
    %v406 = vpop.f32.mrb[0].mxu0
    %v407 = vpop.f32.mrb[0].mxu0
    %v408 = vadd.f32 %v128, %v407
    %v409 = vpop.f32.mrb[0].mxu0
    %410 = vmatprep.mubr.bf16.mxu0 0
    %411 = vmatmul.mubr.bf16.gmra.mrb[0].mxu0 %v259
    %v412 = vpop.f32.mrb[0].mxu0
    %v413 = vadd.f32 %v128, %v412
    %v414 = vpop.f32.mrb[0].mxu0
    %v415 = vpop.f32.mrb[0].mxu0
    %v416 = vadd.f32 %v128, %v415
    %v417 = vpop.f32.mrb[0].mxu0
    %418 = vmatprep.mubr.bf16.mxu0 0
    %419 = vmatmul.mubr.bf16.gmra.mrb[0].mxu0 %v260
    %v420 = vpop.f32.mrb[0].mxu0
    %v421 = vadd.f32 %v128, %v420
    %v422 = vpop.f32.mrb[0].mxu0
    %v423 = vpop.f32.mrb[0].mxu0
    %v424 = vadd.f32 %v128, %v423
    %v425 = vpop.f32.mrb[0].mxu0
    %426 = vmatprep.mubr.bf16.mxu0 0
    %427 = vmatmul.mubr.bf16.gmra.mrb[0].mxu0 %v261
    %v428 = vpop.f32.mrb[0].mxu0
    %v429 = vadd.f32 %v128, %v428
    %v430 = vpop.f32.mrb[0].mxu0
    %v431 = vpop.f32.mrb[0].mxu0
    %v432 = vadd.f32 %v128, %v431
    %v433 = vpop.f32.mrb[0].mxu0
    %434 = vmatprep.mubr.bf16.mxu0 0
    %435 = vmatmul.mubr.bf16.gmra.mrb[0].mxu0 %v262
    %v436 = vpop.f32.mrb[0].mxu0
    %v437 = vadd.f32 %v128, %v436
    %v438 = vpop.f32.mrb[0].mxu0
    %v439 = vpop.f32.mrb[0].mxu0
    %v440 = vadd.f32 %v128, %v439
    %v441 = vpop.f32.mrb[0].mxu0
    %442 = vmatprep.mubr.bf16.mxu0 0
    %443 = vmatmul.mubr.bf16.gmra.mrb[0].mxu0 %v263
    %v444 = vpop.f32.mrb[0].mxu0
    %v445 = vadd.f32 %v128, %v444
    %v446 = vpop.f32.mrb[0].mxu0
    %v447 = vpop.f32.mrb[0].mxu0
    %v448 = vadd.f32 %v128, %v447
    %v449 = vpop.f32.mrb[0].mxu0
    %450 = vmatprep.mubr.bf16.mxu0 0
    %451 = vmatmul.mubr.bf16.gmra.mrb[0].mxu0 %v264
    %v452 = vpop.f32.mrb[0].mxu0
    %v453 = vadd.f32 %v128, %v452
    %v454 = vpop.f32.mrb[0].mxu0
    %v455 = vpop.f32.mrb[0].mxu0
    %v456 = vadd.f32 %v128, %v455
    %v457 = vpop.f32.mrb[0].mxu0
    %458 = vmatprep.mubr.bf16.mxu0 0
    %459 = vmatmul.mubr.bf16.gmra.mrb[0].mxu0 %v265
    %v460 = vpop.f32.mrb[0].mxu0
    %v461 = vadd.f32 %v128, %v460
    %v462 = vpop.f32.mrb[0].mxu0
    %v463 = vpop.f32.mrb[0].mxu0
    %v464 = vadd.f32 %v128, %v463
    %v465 = vpop.f32.mrb[0].mxu0
    %466 = vmatprep.mubr.bf16.mxu0 0
    %467 = vmatmul.mubr.bf16.gmra.mrb[0].mxu0 %v266
    %v468 = vpop.f32.mrb[0].mxu0
    %v469 = vadd.f32 %v128, %v468
    %v470 = vpop.f32.mrb[0].mxu0
    %v471 = vpop.f32.mrb[0].mxu0
    %v472 = vadd.f32 %v128, %v471
    %v473 = vpop.f32.mrb[0].mxu0
    %474 = vmatprep.mubr.bf16.mxu0 0
    %475 = vmatmul.mubr.bf16.gmra.mrb[0].mxu0 %v267
    %v476 = vpop.f32.mrb[0].mxu0
    %v477 = vadd.f32 %v128, %v476
    %v478 = vpop.f32.mrb[0].mxu0
    %v479 = vpop.f32.mrb[0].mxu0
    %v480 = vadd.f32 %v128, %v479
    %v481 = vpop.f32.mrb[0].mxu0
    %482 = vmatprep.mubr.bf16.mxu0 0
    %483 = vmatmul.mubr.bf16.gmra.mrb[0].mxu0 %v268
    %v484 = vpop.f32.mrb[0].mxu0
    %v485 = vadd.f32 %v128, %v484
    %v486 = vpop.f32.mrb[0].mxu0
    %v487 = vpop.f32.mrb[0].mxu0
    %v488 = vadd.f32 %v128, %v487
    %v489 = vpop.f32.mrb[0].mxu0
    %490 = vmatprep.mubr.bf16.mxu0 0
    %491 = vmatmul.mubr.bf16.gmra.mrb[0].mxu0 %v269
    %v492 = vpop.f32.mrb[0].mxu0
    %v493 = vadd.f32 %v128, %v492
    %v494 = vpop.f32.mrb[0].mxu0
    %v495 = vpop.f32.mrb[0].mxu0
    %v496 = vadd.f32 %v128, %v495
    %v497 = vpop.f32.mrb[0].mxu0
    %498 = vmatprep.mubr.bf16.mxu0 0
    %499 = vmatmul.mubr.bf16.gmra.mrb[0].mxu0 %v270
    %v500 = vpop.f32.mrb[0].mxu0
    %v501 = vadd.f32 %v128, %v500
    %v502 = vpop.f32.mrb[0].mxu0
    %v503 = vpop.f32.mrb[0].mxu0
    %v504 = vadd.f32 %v128, %v503
    %v505 = vpop.f32.mrb[0].mxu0
    %506 = vmatprep.mubr.bf16.mxu0 0
    %507 = vmatmul.mubr.bf16.gmra.mrb[0].mxu0 %v271
    %v508 = vpop.f32.mrb[0].mxu0
    %v509 = vadd.f32 %v128, %v508
    %v510 = vpop.f32.mrb[0].mxu0
    %v511 = vpop.f32.mrb[0].mxu0
    %v512 = vadd.f32 %v128, %v511
    %v513 = vpop.f32.mrb[0].mxu0
    %514 = vmatprep.mubr.bf16.mxu0 0
    %515 = vmatmul.mubr.bf16.gmra.mrb[0].mxu0 %v272
    %v516 = vpop.f32.mrb[0].mxu0
    %v517 = vadd.f32 %v128, %v516
    %v518 = vpop.f32.mrb[0].mxu0
    %v519 = vpop.f32.mrb[0].mxu0
    %v520 = vadd.f32 %v128, %v519
    %v521 = vpop.f32.mrb[0].mxu0
    %522 = vmatprep.mubr.bf16.mxu0 0
    %523 = vmatmul.mubr.bf16.gmra.mrb[0].mxu0 %v273
    %v524 = vpop.f32.mrb[0].mxu0
    %v525 = vadd.f32 %v128, %v524
    %v526 = vpop.f32.mrb[0].mxu0
    %v527 = vpop.f32.mrb[0].mxu0
    %v528 = vadd.f32 %v128, %v527
    %v529 = vpop.f32.mrb[0].mxu0
    %530 = vmatprep.mubr.bf16.mxu0 0
    %531 = vmatmul.mubr.bf16.gmra.mrb[0].mxu0 %v274
    %v532 = vpop.f32.mrb[0].mxu0
    %v533 = vadd.f32 %v128, %v532
    %v534 = vpop.f32.mrb[0].mxu0
    %v535 = vpop.f32.mrb[0].mxu0
    %v536 = vadd.f32 %v128, %v535
    %v537 = vpop.f32.mrb[0].mxu0
    %538 = vmatprep.mubr.bf16.mxu0 0
    %539 = vmatmul.mubr.bf16.gmra.mrb[0].mxu0 %v275
    %v540 = vpop.f32.mrb[0].mxu0
    %v541 = vadd.f32 %v128, %v540
    %v542 = vpop.f32.mrb[0].mxu0
    %v543 = vpop.f32.mrb[0].mxu0
    %v544 = vadd.f32 %v128, %v543
    %v545 = vpop.f32.mrb[0].mxu0
    %546 = vmatprep.mubr.bf16.mxu0 0
    %547 = vmatmul.mubr.bf16.gmra.mrb[0].mxu0 %v276
    %v548 = vpop.f32.mrb[0].mxu0
    %v549 = vadd.f32 %v128, %v548
    %v550 = vpop.f32.mrb[0].mxu0
    %v551 = vpop.f32.mrb[0].mxu0
    %v552 = vadd.f32 %v128, %v551
    %v553 = vpop.f32.mrb[0].mxu0
    %554 = vmatprep.mubr.bf16.mxu0 0
    %555 = vmatmul.mubr.bf16.gmra.mrb[0].mxu0 %v277
    %v556 = vpop.f32.mrb[0].mxu0
    %v557 = vadd.f32 %v128, %v556
    %v558 = vpop.f32.mrb[0].mxu0
    %v559 = vpop.f32.mrb[0].mxu0
    %v560 = vadd.f32 %v128, %v559
    %v561 = vpop.f32.mrb[0].mxu0
    %562 = vmatprep.mubr.bf16.mxu0 0
    %563 = vmatmul.mubr.bf16.gmra.mrb[0].mxu0 %v278
    %v564 = vpop.f32.mrb[0].mxu0
    %v565 = vadd.f32 %v128, %v564
    %v566 = vpop.f32.mrb[0].mxu0
    %v567 = vpop.f32.mrb[0].mxu0
    %v568 = vadd.f32 %v128, %v567
    %v569 = vpop.f32.mrb[0].mxu0
    %570 = vmatprep.mubr.bf16.mxu0 0
    %571 = vmatmul.mubr.bf16.gmra.mrb[0].mxu0 %v279
    %v572 = vpop.f32.mrb[0].mxu0
    %v573 = vadd.f32 %v128, %v572
    %v574 = vpop.f32.mrb[0].mxu0
    %v575 = vpop.f32.mrb[0].mxu0
    %v576 = vadd.f32 %v128, %v575
    %v577 = vpop.f32.mrb[0].mxu0
    %578 = vmatprep.mubr.bf16.mxu0 0
    %579 = vmatmul.mubr.bf16.gmra.mrb[0].mxu0 %v280
    %v580 = vpop.f32.mrb[0].mxu0
    %v581 = vadd.f32 %v128, %v580
    %v582 = vpop.f32.mrb[0].mxu0
    %v583 = vpop.f32.mrb[0].mxu0
    %v584 = vadd.f32 %v128, %v583
    %v585 = vpop.f32.mrb[0].mxu0
    %586 = vmatprep.mubr.bf16.mxu0 0
    %587 = vmatmul.mubr.bf16.gmra.mrb[0].mxu0 %v281
    %v588 = vpop.f32.mrb[0].mxu0
    %v589 = vadd.f32 %v128, %v588
    %v590 = vpop.f32.mrb[0].mxu0
    %v591 = vpop.f32.mrb[0].mxu0
    %v592 = vadd.f32 %v128, %v591
    %v593 = vpop.f32.mrb[0].mxu0
    %594 = vmatprep.mubr.bf16.mxu0 0
    %595 = vmatmul.mubr.bf16.gmra.mrb[0].mxu0 %v282
    %v596 = vpop.f32.mrb[0].mxu0
    %v597 = vadd.f32 %v128, %v596
    %v598 = vpop.f32.mrb[0].mxu0
    %v599 = vpop.f32.mrb[0].mxu0
    %v600 = vadd.f32 %v128, %v599
    %v601 = vpop.f32.mrb[0].mxu0
    %602 = vmatprep.mubr.bf16.mxu0 0
    %603 = vmatmul.mubr.bf16.gmra.mrb[0].mxu0 %v283
    %v604 = vpop.f32.mrb[0].mxu0
    %v605 = vadd.f32 %v128, %v604
    %v606 = vpop.f32.mrb[0].mxu0
    %v607 = vpop.f32.mrb[0].mxu0
    %v608 = vadd.f32 %v128, %v607
    %v609 = vpop.f32.mrb[0].mxu0
    %610 = vmatprep.mubr.bf16.mxu0 0
    %611 = vmatmul.mubr.bf16.gmra.mrb[0].mxu0 %v284
    %v612 = vpop.f32.mrb[0].mxu0
    %v613 = vadd.f32 %v128, %v612
    %v614 = vpop.f32.mrb[0].mxu0
    %v615 = vpop.f32.mrb[0].mxu0
    %v616 = vadd.f32 %v128, %v615
    %v617 = vpop.f32.mrb[0].mxu0
    %618 = vmatprep.mubr.bf16.mxu0 0
    %619 = vmatmul.mubr.bf16.gmra.mrb[0].mxu0 %v285
    %v620 = vpop.f32.mrb[0].mxu0
    %v621 = vadd.f32 %v128, %v620
    %v622 = vpop.f32.mrb[0].mxu0
    %v623 = vpop.f32.mrb[0].mxu0
    %v624 = vadd.f32 %v128, %v623
    %v625 = vpop.f32.mrb[0].mxu0
    %626 = vmatprep.mubr.bf16.mxu0 0
    %627 = vmatmul.mubr.bf16.gmra.mrb[0].mxu0 %v286
    %v628 = vpop.f32.mrb[0].mxu0
    %v629 = vadd.f32 %v128, %v628
    %v630 = vpop.f32.mrb[0].mxu0
    %v631 = vpop.f32.mrb[0].mxu0
    %v632 = vadd.f32 %v128, %v631
    %v633 = vpop.f32.mrb[0].mxu0
    %634 = vmatprep.mubr.bf16.mxu0 0
    %635 = vmatmul.mubr.bf16.gmra.mrb[0].mxu0 %v287
    %v636 = vpop.f32.mrb[0].mxu0
    %v637 = vadd.f32 %v128, %v636
    %v638 = vpop.f32.mrb[0].mxu0
    %v639 = vpop.f32.mrb[0].mxu0
    %v640 = vadd.f32 %v128, %v639
    %v641 = vpop.f32.mrb[0].mxu0
    %642 = vmatprep.mubr.bf16.mxu0 0
    %643 = vmatmul.mubr.bf16.gmra.mrb[0].mxu0 %v288
    %v644 = vpop.f32.mrb[0].mxu0
    %v645 = vadd.f32 %v128, %v644
    %v646 = vpop.f32.mrb[0].mxu0
    %v647 = vpop.f32.mrb[0].mxu0
    %v648 = vadd.f32 %v128, %v647
    %v649 = vpop.f32.mrb[0].mxu0
    %650 = vmatprep.mubr.bf16.mxu0 0
    %651 = vmatmul.mubr.bf16.gmra.mrb[0].mxu0 %v289
    %v652 = vpop.f32.mrb[0].mxu0
    %v653 = vadd.f32 %v128, %v652
    %v654 = vpop.f32.mrb[0].mxu0
    %v655 = vpop.f32.mrb[0].mxu0
    %v656 = vadd.f32 %v128, %v655
    %v657 = vpop.f32.mrb[0].mxu0
    %658 = vdwg.mxu0
    %v659 = vmax.f32 %v405, 0.0
    %v660 = vmax.f32 %v408, 0.0
    %v661 = vmax.f32 %v413, 0.0
    %v662 = vmax.f32 %v416, 0.0
    %v663 = vmax.f32 %v421, 0.0
    %v664 = vmax.f32 %v424, 0.0
    %v665 = vmax.f32 %v429, 0.0
    %v666 = vmax.f32 %v432, 0.0
    %v667 = vmax.f32 %v437, 0.0
    %v668 = vmax.f32 %v440, 0.0
    %v669 = vmax.f32 %v445, 0.0
    %v670 = vmax.f32 %v448, 0.0
    %v671 = vmax.f32 %v453, 0.0
    %v672 = vmax.f32 %v456, 0.0
    %v673 = vmax.f32 %v461, 0.0
    %v674 = vmax.f32 %v464, 0.0
    %v675 = vmax.f32 %v469, 0.0
    %v676 = vmax.f32 %v472, 0.0
    %v677 = vmax.f32 %v477, 0.0
    %v678 = vmax.f32 %v480, 0.0
    %v679 = vmax.f32 %v485, 0.0
    %v680 = vmax.f32 %v488, 0.0
    %v681 = vmax.f32 %v493, 0.0
    %v682 = vmax.f32 %v496, 0.0
    %v683 = vmax.f32 %v501, 0.0
    %v684 = vmax.f32 %v504, 0.0
    %v685 = vmax.f32 %v509, 0.0
    %v686 = vmax.f32 %v512, 0.0
    %v687 = vmax.f32 %v517, 0.0
    %v688 = vmax.f32 %v520, 0.0
    %v689 = vmax.f32 %v525, 0.0
    %v690 = vmax.f32 %v528, 0.0
    %v691 = vmax.f32 %v533, 0.0
    %v692 = vmax.f32 %v536, 0.0
    %v693 = vmax.f32 %v541, 0.0
    %v694 = vmax.f32 %v544, 0.0
    %v695 = vmax.f32 %v549, 0.0
    %v696 = vmax.f32 %v552, 0.0
    %v697 = vmax.f32 %v557, 0.0
    %v698 = vmax.f32 %v560, 0.0
    %v699 = vmax.f32 %v565, 0.0
    %v700 = vmax.f32 %v568, 0.0
    %v701 = vmax.f32 %v573, 0.0
    %v702 = vmax.f32 %v576, 0.0
    %v703 = vmax.f32 %v581, 0.0
    %v704 = vmax.f32 %v584, 0.0
    %v705 = vmax.f32 %v589, 0.0
    %v706 = vmax.f32 %v592, 0.0
    %v707 = vmax.f32 %v597, 0.0
    %v708 = vmax.f32 %v600, 0.0
    %v709 = vmax.f32 %v605, 0.0
    %v710 = vmax.f32 %v608, 0.0
    %v711 = vmax.f32 %v613, 0.0
    %v712 = vmax.f32 %v616, 0.0
    %v713 = vmax.f32 %v621, 0.0
    %v714 = vmax.f32 %v624, 0.0
    %v715 = vmax.f32 %v629, 0.0
    %v716 = vmax.f32 %v632, 0.0
    %v717 = vmax.f32 %v637, 0.0
    %v718 = vmax.f32 %v640, 0.0
    %v719 = vmax.f32 %v645, 0.0
    %v720 = vmax.f32 %v648, 0.0
    %v721 = vmax.f32 %v653, 0.0
    %v722 = vmax.f32 %v656, 0.0
    %v723 = vpack.c.bf16 %v660, %v659
    %v724 = vpack.c.bf16 %v662, %v661
    %v725 = vpack.c.bf16 %v664, %v663
    %v726 = vpack.c.bf16 %v666, %v665
    %v727 = vpack.c.bf16 %v668, %v667
    %v728 = vpack.c.bf16 %v670, %v669
    %v729 = vpack.c.bf16 %v672, %v671
    %v730 = vpack.c.bf16 %v674, %v673
    %v731 = vpack.c.bf16 %v676, %v675
    %v732 = vpack.c.bf16 %v678, %v677
    %v733 = vpack.c.bf16 %v680, %v679
    %v734 = vpack.c.bf16 %v682, %v681
    %v735 = vpack.c.bf16 %v684, %v683
    %v736 = vpack.c.bf16 %v686, %v685
    %v737 = vpack.c.bf16 %v688, %v687
    %v738 = vpack.c.bf16 %v690, %v689
    %v739 = vpack.c.bf16 %v692, %v691
    %v740 = vpack.c.bf16 %v694, %v693
    %v741 = vpack.c.bf16 %v696, %v695
    %v742 = vpack.c.bf16 %v698, %v697
    %v743 = vpack.c.bf16 %v700, %v699
    %v744 = vpack.c.bf16 %v702, %v701
    %v745 = vpack.c.bf16 %v704, %v703
    %v746 = vpack.c.bf16 %v706, %v705
    %v747 = vpack.c.bf16 %v708, %v707
    %v748 = vpack.c.bf16 %v710, %v709
    %v749 = vpack.c.bf16 %v712, %v711
    %v750 = vpack.c.bf16 %v714, %v713
    %v751 = vpack.c.bf16 %v716, %v715
    %v752 = vpack.c.bf16 %v718, %v717
    %v753 = vpack.c.bf16 %v720, %v719
    %v754 = vpack.c.bf16 %v722, %v721
    %v755 = vld [vmem:[%s3] sm:$0xf]
    %v756 = vld [vmem:[%s3 + $0x4] sm:$0xf]
    %v757 = vld [vmem:[%s3 + $0x8] sm:$0xf]
    %v758 = vld [vmem:[%s3 + $0xc] sm:$0xf]
    %v759 = vld [vmem:[%s3 + $0x10] sm:$0xf]
    %v760 = vld [vmem:[%s3 + $0x14] sm:$0xf]
    %v761 = vld [vmem:[%s3 + $0x18] sm:$0xf]
    %v762 = vld [vmem:[%s3 + $0x1c] sm:$0xf]
    %v763 = vld [vmem:[%s4] sm:$0x1]
    %v765 = vlaneseq
    %v766 = vshrl.u32 %v765, 7
    %v767 = vsub.s32 0, %v766
    %v768 = vrot.slane %v763, %v767
    %v778 = vunpack.c.l.b16 %v755
    %v779 = vunpack.c.l.b16 %v756
    %v780 = vunpack.c.l.b16 %v757
    %v781 = vunpack.c.l.b16 %v758
    %v782 = vunpack.c.l.b16 %v759
    %v783 = vunpack.c.l.b16 %v760
    %v784 = vunpack.c.l.b16 %v761
    %v785 = vunpack.c.l.b16 %v762
    %v786 = vpack.c.b16 %v779, %v778
    %v787 = vpack.c.b16 %v781, %v780
    %v788 = vpack.c.b16 %v783, %v782
    %v789 = vpack.c.b16 %v785, %v784
    %vm794 = vcmask 523264
    %v796 = vsel %vm794, %v723, 0
    %v799 = vsel %vm794, %v724, 0
    %v802 = vsel %vm794, %v725, 0
    %v805 = vsel %vm794, %v726, 0
    %v808 = vsel %vm794, %v727, 0
    %v811 = vsel %vm794, %v728, 0
    %v814 = vsel %vm794, %v729, 0
    %v817 = vsel %vm794, %v730, 0
    %v820 = vsel %vm794, %v731, 0
    %v823 = vsel %vm794, %v732, 0
    %v826 = vsel %vm794, %v733, 0
    %v829 = vsel %vm794, %v734, 0
    %v832 = vsel %vm794, %v735, 0
    %v835 = vsel %vm794, %v736, 0
    %v838 = vsel %vm794, %v737, 0
    %v841 = vsel %vm794, %v738, 0
    %v844 = vsel %vm794, %v739, 0
    %v847 = vsel %vm794, %v740, 0
    %v850 = vsel %vm794, %v741, 0
    %v853 = vsel %vm794, %v742, 0
    %v856 = vsel %vm794, %v743, 0
    %v859 = vsel %vm794, %v744, 0
    %v862 = vsel %vm794, %v745, 0
    %v865 = vsel %vm794, %v746, 0
    %v868 = vsel %vm794, %v747, 0
    %v871 = vsel %vm794, %v748, 0
    %v874 = vsel %vm794, %v749, 0
    %v877 = vsel %vm794, %v750, 0
    %v880 = vsel %vm794, %v751, 0
    %v883 = vsel %vm794, %v752, 0
    %v886 = vsel %vm794, %v753, 0
    %v889 = vsel %vm794, %v754, 0
    %891 = vmatprep.subr.bf16.mxu0 0
    %892 = vmatpush1.bf16.msra.mxu0 %v786
    %893 = vmatprep.subr.bf16.mxu0 0
    %894 = vmatpush1.bf16.msra.mxu0 %v787
    %895 = vmatprep.subr.bf16.mxu0 0
    %896 = vmatpush1.bf16.msra.mxu0 %v788
    %897 = vmatprep.subr.bf16.mxu0 0
    %898 = vmatpush1.bf16.msra.mxu0 %v789
    %899 = vmatprep.subr.bf16.mxu0 0
    %900 = vmatpush1.bf16.msra.mxu0 0
    %901 = vmatprep.subr.bf16.mxu0 0
    %902 = vmatpush1.bf16.msra.mxu0 0
    %903 = vmatprep.subr.bf16.mxu0 0
    %904 = vmatpush1.bf16.msra.mxu0 0
    %905 = vmatprep.subr.bf16.mxu0 0
    %906 = vmatpush1.bf16.msra.mxu0 0
    %907 = vmatprep.subr.bf16.mxu0 0
    %908 = vmatpush1.bf16.msra.mxu0 0
    %909 = vmatprep.subr.bf16.mxu0 0
    %910 = vmatpush1.bf16.msra.mxu0 0
    %911 = vmatprep.subr.bf16.mxu0 0
    %912 = vmatpush1.bf16.msra.mxu0 0
    %913 = vmatprep.subr.bf16.mxu0 0
    %914 = vmatpush1.bf16.msra.mxu0 0
    %915 = vmatprep.subr.bf16.mxu0 0
    %916 = vmatpush1.bf16.msra.mxu0 0
    %917 = vmatprep.subr.bf16.mxu0 0
    %918 = vmatpush1.bf16.msra.mxu0 0
    %919 = vmatprep.subr.bf16.mxu0 0
    %920 = vmatpush1.bf16.msra.mxu0 0
    %921 = vmatprep.subr.bf16.mxu0 0
    %922 = vmatpush1.bf16.msra.mxu0 0
    %923 = vmatprep.mubr.bf16.mxu0 0
    %924 = vmatmul.mubr.bf16.gmra.mrb[0].mxu0 %v796
    %v925 = vpop.f32.mrb[0].mxu0
    %v926 = vadd.f32 %v768, %v925
    %v927 = vpop.f32.mrb[0].mxu0
    %v928 = vpop.f32.mrb[0].mxu0
    %v929 = vadd.f32 %v768, %v928
    %v930 = vpop.f32.mrb[0].mxu0
    %931 = vmatprep.mubr.bf16.mxu0 0
    %932 = vmatmul.mubr.bf16.gmra.mrb[0].mxu0 %v799
    %v933 = vpop.f32.mrb[0].mxu0
    %v934 = vadd.f32 %v768, %v933
    %v935 = vpop.f32.mrb[0].mxu0
    %v936 = vpop.f32.mrb[0].mxu0
    %v937 = vadd.f32 %v768, %v936
    %v938 = vpop.f32.mrb[0].mxu0
    %939 = vmatprep.mubr.bf16.mxu0 0
    %940 = vmatmul.mubr.bf16.gmra.mrb[0].mxu0 %v802
    %v941 = vpop.f32.mrb[0].mxu0
    %v942 = vadd.f32 %v768, %v941
    %v943 = vpop.f32.mrb[0].mxu0
    %v944 = vpop.f32.mrb[0].mxu0
    %v945 = vadd.f32 %v768, %v944
    %v946 = vpop.f32.mrb[0].mxu0
    %947 = vmatprep.mubr.bf16.mxu0 0
    %948 = vmatmul.mubr.bf16.gmra.mrb[0].mxu0 %v805
    %v949 = vpop.f32.mrb[0].mxu0
    %v950 = vadd.f32 %v768, %v949
    %v951 = vpop.f32.mrb[0].mxu0
    %v952 = vpop.f32.mrb[0].mxu0
    %v953 = vadd.f32 %v768, %v952
    %v954 = vpop.f32.mrb[0].mxu0
    %955 = vmatprep.mubr.bf16.mxu0 0
    %956 = vmatmul.mubr.bf16.gmra.mrb[0].mxu0 %v808
    %v957 = vpop.f32.mrb[0].mxu0
    %v958 = vadd.f32 %v768, %v957
    %v959 = vpop.f32.mrb[0].mxu0
    %v960 = vpop.f32.mrb[0].mxu0
    %v961 = vadd.f32 %v768, %v960
    %v962 = vpop.f32.mrb[0].mxu0
    %963 = vmatprep.mubr.bf16.mxu0 0
    %964 = vmatmul.mubr.bf16.gmra.mrb[0].mxu0 %v811
    %v965 = vpop.f32.mrb[0].mxu0
    %v966 = vadd.f32 %v768, %v965
    %v967 = vpop.f32.mrb[0].mxu0
    %v968 = vpop.f32.mrb[0].mxu0
    %v969 = vadd.f32 %v768, %v968
    %v970 = vpop.f32.mrb[0].mxu0
    %971 = vmatprep.mubr.bf16.mxu0 0
    %972 = vmatmul.mubr.bf16.gmra.mrb[0].mxu0 %v814
    %v973 = vpop.f32.mrb[0].mxu0
    %v974 = vadd.f32 %v768, %v973
    %v975 = vpop.f32.mrb[0].mxu0
    %v976 = vpop.f32.mrb[0].mxu0
    %v977 = vadd.f32 %v768, %v976
    %v978 = vpop.f32.mrb[0].mxu0
    %979 = vmatprep.mubr.bf16.mxu0 0
    %980 = vmatmul.mubr.bf16.gmra.mrb[0].mxu0 %v817
    %v981 = vpop.f32.mrb[0].mxu0
    %v982 = vadd.f32 %v768, %v981
    %v983 = vpop.f32.mrb[0].mxu0
    %v984 = vpop.f32.mrb[0].mxu0
    %v985 = vadd.f32 %v768, %v984
    %v986 = vpop.f32.mrb[0].mxu0
    %987 = vmatprep.mubr.bf16.mxu0 0
    %988 = vmatmul.mubr.bf16.gmra.mrb[0].mxu0 %v820
    %v989 = vpop.f32.mrb[0].mxu0
    %v990 = vadd.f32 %v768, %v989
    %v991 = vpop.f32.mrb[0].mxu0
    %v992 = vpop.f32.mrb[0].mxu0
    %v993 = vadd.f32 %v768, %v992
    %v994 = vpop.f32.mrb[0].mxu0
    %995 = vmatprep.mubr.bf16.mxu0 0
    %996 = vmatmul.mubr.bf16.gmra.mrb[0].mxu0 %v823
    %v997 = vpop.f32.mrb[0].mxu0
    %v998 = vadd.f32 %v768, %v997
    %v999 = vpop.f32.mrb[0].mxu0
    %v1000 = vpop.f32.mrb[0].mxu0
    %v1001 = vadd.f32 %v768, %v1000
    %v1002 = vpop.f32.mrb[0].mxu0
    %1003 = vmatprep.mubr.bf16.mxu0 0
    %1004 = vmatmul.mubr.bf16.gmra.mrb[0].mxu0 %v826
    %v1005 = vpop.f32.mrb[0].mxu0
    %v1006 = vadd.f32 %v768, %v1005
    %v1007 = vpop.f32.mrb[0].mxu0
    %v1008 = vpop.f32.mrb[0].mxu0
    %v1009 = vadd.f32 %v768, %v1008
    %v1010 = vpop.f32.mrb[0].mxu0
    %1011 = vmatprep.mubr.bf16.mxu0 0
    %1012 = vmatmul.mubr.bf16.gmra.mrb[0].mxu0 %v829
    %v1013 = vpop.f32.mrb[0].mxu0
    %v1014 = vadd.f32 %v768, %v1013
    %v1015 = vpop.f32.mrb[0].mxu0
    %v1016 = vpop.f32.mrb[0].mxu0
    %v1017 = vadd.f32 %v768, %v1016
    %v1018 = vpop.f32.mrb[0].mxu0
    %1019 = vmatprep.mubr.bf16.mxu0 0
    %1020 = vmatmul.mubr.bf16.gmra.mrb[0].mxu0 %v832
    %v1021 = vpop.f32.mrb[0].mxu0
    %v1022 = vadd.f32 %v768, %v1021
    %v1023 = vpop.f32.mrb[0].mxu0
    %v1024 = vpop.f32.mrb[0].mxu0
    %v1025 = vadd.f32 %v768, %v1024
    %v1026 = vpop.f32.mrb[0].mxu0
    %1027 = vmatprep.mubr.bf16.mxu0 0
    %1028 = vmatmul.mubr.bf16.gmra.mrb[0].mxu0 %v835
    %v1029 = vpop.f32.mrb[0].mxu0
    %v1030 = vadd.f32 %v768, %v1029
    %v1031 = vpop.f32.mrb[0].mxu0
    %v1032 = vpop.f32.mrb[0].mxu0
    %v1033 = vadd.f32 %v768, %v1032
    %v1034 = vpop.f32.mrb[0].mxu0
    %1035 = vmatprep.mubr.bf16.mxu0 0
    %1036 = vmatmul.mubr.bf16.gmra.mrb[0].mxu0 %v838
    %v1037 = vpop.f32.mrb[0].mxu0
    %v1038 = vadd.f32 %v768, %v1037
    %v1039 = vpop.f32.mrb[0].mxu0
    %v1040 = vpop.f32.mrb[0].mxu0
    %v1041 = vadd.f32 %v768, %v1040
    %v1042 = vpop.f32.mrb[0].mxu0
    %1043 = vmatprep.mubr.bf16.mxu0 0
    %1044 = vmatmul.mubr.bf16.gmra.mrb[0].mxu0 %v841
    %v1045 = vpop.f32.mrb[0].mxu0
    %v1046 = vadd.f32 %v768, %v1045
    %v1047 = vpop.f32.mrb[0].mxu0
    %v1048 = vpop.f32.mrb[0].mxu0
    %v1049 = vadd.f32 %v768, %v1048
    %v1050 = vpop.f32.mrb[0].mxu0
    %1051 = vmatprep.mubr.bf16.mxu0 0
    %1052 = vmatmul.mubr.bf16.gmra.mrb[0].mxu0 %v844
    %v1053 = vpop.f32.mrb[0].mxu0
    %v1054 = vadd.f32 %v768, %v1053
    %v1055 = vpop.f32.mrb[0].mxu0
    %v1056 = vpop.f32.mrb[0].mxu0
    %v1057 = vadd.f32 %v768, %v1056
    %v1058 = vpop.f32.mrb[0].mxu0
    %1059 = vmatprep.mubr.bf16.mxu0 0
    %1060 = vmatmul.mubr.bf16.gmra.mrb[0].mxu0 %v847
    %v1061 = vpop.f32.mrb[0].mxu0
    %v1062 = vadd.f32 %v768, %v1061
    %v1063 = vpop.f32.mrb[0].mxu0
    %v1064 = vpop.f32.mrb[0].mxu0
    %v1065 = vadd.f32 %v768, %v1064
    %v1066 = vpop.f32.mrb[0].mxu0
    %1067 = vmatprep.mubr.bf16.mxu0 0
    %1068 = vmatmul.mubr.bf16.gmra.mrb[0].mxu0 %v850
    %v1069 = vpop.f32.mrb[0].mxu0
    %v1070 = vadd.f32 %v768, %v1069
    %v1071 = vpop.f32.mrb[0].mxu0
    %v1072 = vpop.f32.mrb[0].mxu0
    %v1073 = vadd.f32 %v768, %v1072
    %v1074 = vpop.f32.mrb[0].mxu0
    %1075 = vmatprep.mubr.bf16.mxu0 0
    %1076 = vmatmul.mubr.bf16.gmra.mrb[0].mxu0 %v853
    %v1077 = vpop.f32.mrb[0].mxu0
    %v1078 = vadd.f32 %v768, %v1077
    %v1079 = vpop.f32.mrb[0].mxu0
    %v1080 = vpop.f32.mrb[0].mxu0
    %v1081 = vadd.f32 %v768, %v1080
    %v1082 = vpop.f32.mrb[0].mxu0
    %1083 = vmatprep.mubr.bf16.mxu0 0
    %1084 = vmatmul.mubr.bf16.gmra.mrb[0].mxu0 %v856
    %v1085 = vpop.f32.mrb[0].mxu0
    %v1086 = vadd.f32 %v768, %v1085
    %v1087 = vpop.f32.mrb[0].mxu0
    %v1088 = vpop.f32.mrb[0].mxu0
    %v1089 = vadd.f32 %v768, %v1088
    %v1090 = vpop.f32.mrb[0].mxu0
    %1091 = vmatprep.mubr.bf16.mxu0 0
    %1092 = vmatmul.mubr.bf16.gmra.mrb[0].mxu0 %v859
    %v1093 = vpop.f32.mrb[0].mxu0
    %v1094 = vadd.f32 %v768, %v1093
    %v1095 = vpop.f32.mrb[0].mxu0
    %v1096 = vpop.f32.mrb[0].mxu0
    %v1097 = vadd.f32 %v768, %v1096
    %v1098 = vpop.f32.mrb[0].mxu0
    %1099 = vmatprep.mubr.bf16.mxu0 0
    %1100 = vmatmul.mubr.bf16.gmra.mrb[0].mxu0 %v862
    %v1101 = vpop.f32.mrb[0].mxu0
    %v1102 = vadd.f32 %v768, %v1101
    %v1103 = vpop.f32.mrb[0].mxu0
    %v1104 = vpop.f32.mrb[0].mxu0
    %v1105 = vadd.f32 %v768, %v1104
    %v1106 = vpop.f32.mrb[0].mxu0
    %1107 = vmatprep.mubr.bf16.mxu0 0
    %1108 = vmatmul.mubr.bf16.gmra.mrb[0].mxu0 %v865
    %v1109 = vpop.f32.mrb[0].mxu0
    %v1110 = vadd.f32 %v768, %v1109
    %v1111 = vpop.f32.mrb[0].mxu0
    %v1112 = vpop.f32.mrb[0].mxu0
    %v1113 = vadd.f32 %v768, %v1112
    %v1114 = vpop.f32.mrb[0].mxu0
    %1115 = vmatprep.mubr.bf16.mxu0 0
    %1116 = vmatmul.mubr.bf16.gmra.mrb[0].mxu0 %v868
    %v1117 = vpop.f32.mrb[0].mxu0
    %v1118 = vadd.f32 %v768, %v1117
    %v1119 = vpop.f32.mrb[0].mxu0
    %v1120 = vpop.f32.mrb[0].mxu0
    %v1121 = vadd.f32 %v768, %v1120
    %v1122 = vpop.f32.mrb[0].mxu0
    %1123 = vmatprep.mubr.bf16.mxu0 0
    %1124 = vmatmul.mubr.bf16.gmra.mrb[0].mxu0 %v871
    %v1125 = vpop.f32.mrb[0].mxu0
    %v1126 = vadd.f32 %v768, %v1125
    %v1127 = vpop.f32.mrb[0].mxu0
    %v1128 = vpop.f32.mrb[0].mxu0
    %v1129 = vadd.f32 %v768, %v1128
    %v1130 = vpop.f32.mrb[0].mxu0
    %1131 = vmatprep.mubr.bf16.mxu0 0
    %1132 = vmatmul.mubr.bf16.gmra.mrb[0].mxu0 %v874
    %v1133 = vpop.f32.mrb[0].mxu0
    %v1134 = vadd.f32 %v768, %v1133
    %v1135 = vpop.f32.mrb[0].mxu0
    %v1136 = vpop.f32.mrb[0].mxu0
    %v1137 = vadd.f32 %v768, %v1136
    %v1138 = vpop.f32.mrb[0].mxu0
    %1139 = vmatprep.mubr.bf16.mxu0 0
    %1140 = vmatmul.mubr.bf16.gmra.mrb[0].mxu0 %v877
    %v1141 = vpop.f32.mrb[0].mxu0
    %v1142 = vadd.f32 %v768, %v1141
    %v1143 = vpop.f32.mrb[0].mxu0
    %v1144 = vpop.f32.mrb[0].mxu0
    %v1145 = vadd.f32 %v768, %v1144
    %v1146 = vpop.f32.mrb[0].mxu0
    %1147 = vmatprep.mubr.bf16.mxu0 0
    %1148 = vmatmul.mubr.bf16.gmra.mrb[0].mxu0 %v880
    %v1149 = vpop.f32.mrb[0].mxu0
    %v1150 = vadd.f32 %v768, %v1149
    %v1151 = vpop.f32.mrb[0].mxu0
    %v1152 = vpop.f32.mrb[0].mxu0
    %v1153 = vadd.f32 %v768, %v1152
    %v1154 = vpop.f32.mrb[0].mxu0
    %1155 = vmatprep.mubr.bf16.mxu0 0
    %1156 = vmatmul.mubr.bf16.gmra.mrb[0].mxu0 %v883
    %v1157 = vpop.f32.mrb[0].mxu0
    %v1158 = vadd.f32 %v768, %v1157
    %v1159 = vpop.f32.mrb[0].mxu0
    %v1160 = vpop.f32.mrb[0].mxu0
    %v1161 = vadd.f32 %v768, %v1160
    %v1162 = vpop.f32.mrb[0].mxu0
    %1163 = vmatprep.mubr.bf16.mxu0 0
    %1164 = vmatmul.mubr.bf16.gmra.mrb[0].mxu0 %v886
    %v1165 = vpop.f32.mrb[0].mxu0
    %v1166 = vadd.f32 %v768, %v1165
    %v1167 = vpop.f32.mrb[0].mxu0
    %v1168 = vpop.f32.mrb[0].mxu0
    %v1169 = vadd.f32 %v768, %v1168
    %v1170 = vpop.f32.mrb[0].mxu0
    %1171 = vmatprep.mubr.bf16.mxu0 0
    %1172 = vmatmul.mubr.bf16.gmra.mrb[0].mxu0 %v889
    %v1173 = vpop.f32.mrb[0].mxu0
    %v1174 = vadd.f32 %v768, %v1173
    %v1175 = vpop.f32.mrb[0].mxu0
    %v1176 = vpop.f32.mrb[0].mxu0
    %v1177 = vadd.f32 %v768, %v1176
    %v1178 = vpop.f32.mrb[0].mxu0
    %1179 = vdwg.mxu0
    %v1180 = vmax.f32 %v926, 0.0
    %v1181 = vmax.f32 %v929, 0.0
    %v1182 = vmax.f32 %v934, 0.0
    %v1183 = vmax.f32 %v937, 0.0
    %v1184 = vmax.f32 %v942, 0.0
    %v1185 = vmax.f32 %v945, 0.0
    %v1186 = vmax.f32 %v950, 0.0
    %v1187 = vmax.f32 %v953, 0.0
    %v1188 = vmax.f32 %v958, 0.0
    %v1189 = vmax.f32 %v961, 0.0
    %v1190 = vmax.f32 %v966, 0.0
    %v1191 = vmax.f32 %v969, 0.0
    %v1192 = vmax.f32 %v974, 0.0
    %v1193 = vmax.f32 %v977, 0.0
    %v1194 = vmax.f32 %v982, 0.0
    %v1195 = vmax.f32 %v985, 0.0
    %v1196 = vmax.f32 %v990, 0.0
    %v1197 = vmax.f32 %v993, 0.0
    %v1198 = vmax.f32 %v998, 0.0
    %v1199 = vmax.f32 %v1001, 0.0
    %v1200 = vmax.f32 %v1006, 0.0
    %v1201 = vmax.f32 %v1009, 0.0
    %v1202 = vmax.f32 %v1014, 0.0
    %v1203 = vmax.f32 %v1017, 0.0
    %v1204 = vmax.f32 %v1022, 0.0
    %v1205 = vmax.f32 %v1025, 0.0
    %v1206 = vmax.f32 %v1030, 0.0
    %v1207 = vmax.f32 %v1033, 0.0
    %v1208 = vmax.f32 %v1038, 0.0
    %v1209 = vmax.f32 %v1041, 0.0
    %v1210 = vmax.f32 %v1046, 0.0
    %v1211 = vmax.f32 %v1049, 0.0
    %v1212 = vmax.f32 %v1054, 0.0
    %v1213 = vmax.f32 %v1057, 0.0
    %v1214 = vmax.f32 %v1062, 0.0
    %v1215 = vmax.f32 %v1065, 0.0
    %v1216 = vmax.f32 %v1070, 0.0
    %v1217 = vmax.f32 %v1073, 0.0
    %v1218 = vmax.f32 %v1078, 0.0
    %v1219 = vmax.f32 %v1081, 0.0
    %v1220 = vmax.f32 %v1086, 0.0
    %v1221 = vmax.f32 %v1089, 0.0
    %v1222 = vmax.f32 %v1094, 0.0
    %v1223 = vmax.f32 %v1097, 0.0
    %v1224 = vmax.f32 %v1102, 0.0
    %v1225 = vmax.f32 %v1105, 0.0
    %v1226 = vmax.f32 %v1110, 0.0
    %v1227 = vmax.f32 %v1113, 0.0
    %v1228 = vmax.f32 %v1118, 0.0
    %v1229 = vmax.f32 %v1121, 0.0
    %v1230 = vmax.f32 %v1126, 0.0
    %v1231 = vmax.f32 %v1129, 0.0
    %v1232 = vmax.f32 %v1134, 0.0
    %v1233 = vmax.f32 %v1137, 0.0
    %v1234 = vmax.f32 %v1142, 0.0
    %v1235 = vmax.f32 %v1145, 0.0
    %v1236 = vmax.f32 %v1150, 0.0
    %v1237 = vmax.f32 %v1153, 0.0
    %v1238 = vmax.f32 %v1158, 0.0
    %v1239 = vmax.f32 %v1161, 0.0
    %v1240 = vmax.f32 %v1166, 0.0
    %v1241 = vmax.f32 %v1169, 0.0
    %v1242 = vmax.f32 %v1174, 0.0
    %v1243 = vmax.f32 %v1177, 0.0
    %v1244 = vld [vmem:[%s5] sm:$0x1]
    %v1246 = vlaneseq
    %v1247 = vshrl.u32 %v1246, 7
    %v1248 = vsub.s32 0, %v1247
    %v1249 = vrot.slane %v1244, %v1248
    %v1251 = vmul.f32 %v1180, %v1249
    %v1252 = vmul.f32 %v1181, %v1249
    %v1253 = vmul.f32 %v1182, %v1249
    %v1254 = vmul.f32 %v1183, %v1249
    %v1255 = vmul.f32 %v1184, %v1249
    %v1256 = vmul.f32 %v1185, %v1249
    %v1257 = vmul.f32 %v1186, %v1249
    %v1258 = vmul.f32 %v1187, %v1249
    %v1259 = vmul.f32 %v1188, %v1249
    %v1260 = vmul.f32 %v1189, %v1249
    %v1261 = vmul.f32 %v1190, %v1249
    %v1262 = vmul.f32 %v1191, %v1249
    %v1263 = vmul.f32 %v1192, %v1249
    %v1264 = vmul.f32 %v1193, %v1249
    %v1265 = vmul.f32 %v1194, %v1249
    %v1266 = vmul.f32 %v1195, %v1249
    %v1267 = vmul.f32 %v1196, %v1249
    %v1268 = vmul.f32 %v1197, %v1249
    %v1269 = vmul.f32 %v1198, %v1249
    %v1270 = vmul.f32 %v1199, %v1249
    %v1271 = vmul.f32 %v1200, %v1249
    %v1272 = vmul.f32 %v1201, %v1249
    %v1273 = vmul.f32 %v1202, %v1249
    %v1274 = vmul.f32 %v1203, %v1249
    %v1275 = vmul.f32 %v1204, %v1249
    %v1276 = vmul.f32 %v1205, %v1249
    %v1277 = vmul.f32 %v1206, %v1249
    %v1278 = vmul.f32 %v1207, %v1249
    %v1279 = vmul.f32 %v1208, %v1249
    %v1280 = vmul.f32 %v1209, %v1249
    %v1281 = vmul.f32 %v1210, %v1249
    %v1282 = vmul.f32 %v1211, %v1249
    %v1283 = vmul.f32 %v1212, %v1249
    %v1284 = vmul.f32 %v1213, %v1249
    %v1285 = vmul.f32 %v1214, %v1249
    %v1286 = vmul.f32 %v1215, %v1249
    %v1287 = vmul.f32 %v1216, %v1249
    %v1288 = vmul.f32 %v1217, %v1249
    %v1289 = vmul.f32 %v1218, %v1249
    %v1290 = vmul.f32 %v1219, %v1249
    %v1291 = vmul.f32 %v1220, %v1249
    %v1292 = vmul.f32 %v1221, %v1249
    %v1293 = vmul.f32 %v1222, %v1249
    %v1294 = vmul.f32 %v1223, %v1249
    %v1295 = vmul.f32 %v1224, %v1249
    %v1296 = vmul.f32 %v1225, %v1249
    %v1297 = vmul.f32 %v1226, %v1249
    %v1298 = vmul.f32 %v1227, %v1249
    %v1299 = vmul.f32 %v1228, %v1249
    %v1300 = vmul.f32 %v1229, %v1249
    %v1301 = vmul.f32 %v1230, %v1249
    %v1302 = vmul.f32 %v1231, %v1249
    %v1303 = vmul.f32 %v1232, %v1249
    %v1304 = vmul.f32 %v1233, %v1249
    %v1305 = vmul.f32 %v1234, %v1249
    %v1306 = vmul.f32 %v1235, %v1249
    %v1307 = vmul.f32 %v1236, %v1249
    %v1308 = vmul.f32 %v1237, %v1249
    %v1309 = vmul.f32 %v1238, %v1249
    %v1310 = vmul.f32 %v1239, %v1249
    %v1311 = vmul.f32 %v1240, %v1249
    %v1312 = vmul.f32 %v1241, %v1249
    %v1313 = vmul.f32 %v1242, %v1249
    %v1314 = vmul.f32 %v1243, %v1249
    %vm1315 = vcmask 261120
    %v1316 = vsel %vm1315, %v1251, 0.0
    %1317 = vadd.xlane.f32.xlu0 %v1316
    %v1318 = vpop.xlane.xlu0 %1317
    %v1319 = vsel %vm1315, %v1252, 0.0
    %1320 = vadd.xlane.f32.xlu0 %v1319
    %v1321 = vpop.xlane.xlu0 %1320
    %v1322 = vsel %vm1315, %v1253, 0.0
    %1323 = vadd.xlane.f32.xlu0 %v1322
    %v1324 = vpop.xlane.xlu0 %1323
    %v1325 = vsel %vm1315, %v1254, 0.0
    %1326 = vadd.xlane.f32.xlu0 %v1325
    %v1327 = vpop.xlane.xlu0 %1326
    %v1328 = vsel %vm1315, %v1255, 0.0
    %1329 = vadd.xlane.f32.xlu0 %v1328
    %v1330 = vpop.xlane.xlu0 %1329
    %v1331 = vsel %vm1315, %v1256, 0.0
    %1332 = vadd.xlane.f32.xlu0 %v1331
    %v1333 = vpop.xlane.xlu0 %1332
    %v1334 = vsel %vm1315, %v1257, 0.0
    %1335 = vadd.xlane.f32.xlu0 %v1334
    %v1336 = vpop.xlane.xlu0 %1335
    %v1337 = vsel %vm1315, %v1258, 0.0
    %1338 = vadd.xlane.f32.xlu0 %v1337
    %v1339 = vpop.xlane.xlu0 %1338
    %v1340 = vsel %vm1315, %v1259, 0.0
    %1341 = vadd.xlane.f32.xlu0 %v1340
    %v1342 = vpop.xlane.xlu0 %1341
    %v1343 = vsel %vm1315, %v1260, 0.0
    %1344 = vadd.xlane.f32.xlu0 %v1343
    %v1345 = vpop.xlane.xlu0 %1344
    %v1346 = vsel %vm1315, %v1261, 0.0
    %1347 = vadd.xlane.f32.xlu0 %v1346
    %v1348 = vpop.xlane.xlu0 %1347
    %v1349 = vsel %vm1315, %v1262, 0.0
    %1350 = vadd.xlane.f32.xlu0 %v1349
    %v1351 = vpop.xlane.xlu0 %1350
    %v1352 = vsel %vm1315, %v1263, 0.0
    %1353 = vadd.xlane.f32.xlu0 %v1352
    %v1354 = vpop.xlane.xlu0 %1353
    %v1355 = vsel %vm1315, %v1264, 0.0
    %1356 = vadd.xlane.f32.xlu0 %v1355
    %v1357 = vpop.xlane.xlu0 %1356
    %v1358 = vsel %vm1315, %v1265, 0.0
    %1359 = vadd.xlane.f32.xlu0 %v1358
    %v1360 = vpop.xlane.xlu0 %1359
    %v1361 = vsel %vm1315, %v1266, 0.0
    %1362 = vadd.xlane.f32.xlu0 %v1361
    %v1363 = vpop.xlane.xlu0 %1362
    %v1364 = vsel %vm1315, %v1267, 0.0
    %1365 = vadd.xlane.f32.xlu0 %v1364
    %v1366 = vpop.xlane.xlu0 %1365
    %v1367 = vsel %vm1315, %v1268, 0.0
    %1368 = vadd.xlane.f32.xlu0 %v1367
    %v1369 = vpop.xlane.xlu0 %1368
    %v1370 = vsel %vm1315, %v1269, 0.0
    %1371 = vadd.xlane.f32.xlu0 %v1370
    %v1372 = vpop.xlane.xlu0 %1371
    %v1373 = vsel %vm1315, %v1270, 0.0
    %1374 = vadd.xlane.f32.xlu0 %v1373
    %v1375 = vpop.xlane.xlu0 %1374
    %v1376 = vsel %vm1315, %v1271, 0.0
    %1377 = vadd.xlane.f32.xlu0 %v1376
    %v1378 = vpop.xlane.xlu0 %1377
    %v1379 = vsel %vm1315, %v1272, 0.0
    %1380 = vadd.xlane.f32.xlu0 %v1379
    %v1381 = vpop.xlane.xlu0 %1380
    %v1382 = vsel %vm1315, %v1273, 0.0
    %1383 = vadd.xlane.f32.xlu0 %v1382
    %v1384 = vpop.xlane.xlu0 %1383
    %v1385 = vsel %vm1315, %v1274, 0.0
    %1386 = vadd.xlane.f32.xlu0 %v1385
    %v1387 = vpop.xlane.xlu0 %1386
    %v1388 = vsel %vm1315, %v1275, 0.0
    %1389 = vadd.xlane.f32.xlu0 %v1388
    %v1390 = vpop.xlane.xlu0 %1389
    %v1391 = vsel %vm1315, %v1276, 0.0
    %1392 = vadd.xlane.f32.xlu0 %v1391
    %v1393 = vpop.xlane.xlu0 %1392
    %v1394 = vsel %vm1315, %v1277, 0.0
    %1395 = vadd.xlane.f32.xlu0 %v1394
    %v1396 = vpop.xlane.xlu0 %1395
    %v1397 = vsel %vm1315, %v1278, 0.0
    %1398 = vadd.xlane.f32.xlu0 %v1397
    %v1399 = vpop.xlane.xlu0 %1398
    %v1400 = vsel %vm1315, %v1279, 0.0
    %1401 = vadd.xlane.f32.xlu0 %v1400
    %v1402 = vpop.xlane.xlu0 %1401
    %v1403 = vsel %vm1315, %v1280, 0.0
    %1404 = vadd.xlane.f32.xlu0 %v1403
    %v1405 = vpop.xlane.xlu0 %1404
    %v1406 = vsel %vm1315, %v1281, 0.0
    %1407 = vadd.xlane.f32.xlu0 %v1406
    %v1408 = vpop.xlane.xlu0 %1407
    %v1409 = vsel %vm1315, %v1282, 0.0
    %1410 = vadd.xlane.f32.xlu0 %v1409
    %v1411 = vpop.xlane.xlu0 %1410
    %v1412 = vsel %vm1315, %v1283, 0.0
    %1413 = vadd.xlane.f32.xlu0 %v1412
    %v1414 = vpop.xlane.xlu0 %1413
    %v1415 = vsel %vm1315, %v1284, 0.0
    %1416 = vadd.xlane.f32.xlu0 %v1415
    %v1417 = vpop.xlane.xlu0 %1416
    %v1418 = vsel %vm1315, %v1285, 0.0
    %1419 = vadd.xlane.f32.xlu0 %v1418
    %v1420 = vpop.xlane.xlu0 %1419
    %v1421 = vsel %vm1315, %v1286, 0.0
    %1422 = vadd.xlane.f32.xlu0 %v1421
    %v1423 = vpop.xlane.xlu0 %1422
    %v1424 = vsel %vm1315, %v1287, 0.0
    %1425 = vadd.xlane.f32.xlu0 %v1424
    %v1426 = vpop.xlane.xlu0 %1425
    %v1427 = vsel %vm1315, %v1288, 0.0
    %1428 = vadd.xlane.f32.xlu0 %v1427
    %v1429 = vpop.xlane.xlu0 %1428
    %v1430 = vsel %vm1315, %v1289, 0.0
    %1431 = vadd.xlane.f32.xlu0 %v1430
    %v1432 = vpop.xlane.xlu0 %1431
    %v1433 = vsel %vm1315, %v1290, 0.0
    %1434 = vadd.xlane.f32.xlu0 %v1433
    %v1435 = vpop.xlane.xlu0 %1434
    %v1436 = vsel %vm1315, %v1291, 0.0
    %1437 = vadd.xlane.f32.xlu0 %v1436
    %v1438 = vpop.xlane.xlu0 %1437
    %v1439 = vsel %vm1315, %v1292, 0.0
    %1440 = vadd.xlane.f32.xlu0 %v1439
    %v1441 = vpop.xlane.xlu0 %1440
    %v1442 = vsel %vm1315, %v1293, 0.0
    %1443 = vadd.xlane.f32.xlu0 %v1442
    %v1444 = vpop.xlane.xlu0 %1443
    %v1445 = vsel %vm1315, %v1294, 0.0
    %1446 = vadd.xlane.f32.xlu0 %v1445
    %v1447 = vpop.xlane.xlu0 %1446
    %v1448 = vsel %vm1315, %v1295, 0.0
    %1449 = vadd.xlane.f32.xlu0 %v1448
    %v1450 = vpop.xlane.xlu0 %1449
    %v1451 = vsel %vm1315, %v1296, 0.0
    %1452 = vadd.xlane.f32.xlu0 %v1451
    %v1453 = vpop.xlane.xlu0 %1452
    %v1454 = vsel %vm1315, %v1297, 0.0
    %1455 = vadd.xlane.f32.xlu0 %v1454
    %v1456 = vpop.xlane.xlu0 %1455
    %v1457 = vsel %vm1315, %v1298, 0.0
    %1458 = vadd.xlane.f32.xlu0 %v1457
    %v1459 = vpop.xlane.xlu0 %1458
    %v1460 = vsel %vm1315, %v1299, 0.0
    %1461 = vadd.xlane.f32.xlu0 %v1460
    %v1462 = vpop.xlane.xlu0 %1461
    %v1463 = vsel %vm1315, %v1300, 0.0
    %1464 = vadd.xlane.f32.xlu0 %v1463
    %v1465 = vpop.xlane.xlu0 %1464
    %v1466 = vsel %vm1315, %v1301, 0.0
    %1467 = vadd.xlane.f32.xlu0 %v1466
    %v1468 = vpop.xlane.xlu0 %1467
    %v1469 = vsel %vm1315, %v1302, 0.0
    %1470 = vadd.xlane.f32.xlu0 %v1469
    %v1471 = vpop.xlane.xlu0 %1470
    %v1472 = vsel %vm1315, %v1303, 0.0
    %1473 = vadd.xlane.f32.xlu0 %v1472
    %v1474 = vpop.xlane.xlu0 %1473
    %v1475 = vsel %vm1315, %v1304, 0.0
    %1476 = vadd.xlane.f32.xlu0 %v1475
    %v1477 = vpop.xlane.xlu0 %1476
    %v1478 = vsel %vm1315, %v1305, 0.0
    %1479 = vadd.xlane.f32.xlu0 %v1478
    %v1480 = vpop.xlane.xlu0 %1479
    %v1481 = vsel %vm1315, %v1306, 0.0
    %1482 = vadd.xlane.f32.xlu0 %v1481
    %v1483 = vpop.xlane.xlu0 %1482
    %v1484 = vsel %vm1315, %v1307, 0.0
    %1485 = vadd.xlane.f32.xlu0 %v1484
    %v1486 = vpop.xlane.xlu0 %1485
    %v1487 = vsel %vm1315, %v1308, 0.0
    %1488 = vadd.xlane.f32.xlu0 %v1487
    %v1489 = vpop.xlane.xlu0 %1488
    %v1490 = vsel %vm1315, %v1309, 0.0
    %1491 = vadd.xlane.f32.xlu0 %v1490
    %v1492 = vpop.xlane.xlu0 %1491
    %v1493 = vsel %vm1315, %v1310, 0.0
    %1494 = vadd.xlane.f32.xlu0 %v1493
    %v1495 = vpop.xlane.xlu0 %1494
    %v1496 = vsel %vm1315, %v1311, 0.0
    %1497 = vadd.xlane.f32.xlu0 %v1496
    %v1498 = vpop.xlane.xlu0 %1497
    %v1499 = vsel %vm1315, %v1312, 0.0
    %1500 = vadd.xlane.f32.xlu0 %v1499
    %v1501 = vpop.xlane.xlu0 %1500
    %v1502 = vsel %vm1315, %v1313, 0.0
    %1503 = vadd.xlane.f32.xlu0 %v1502
    %v1504 = vpop.xlane.xlu0 %1503
    %v1505 = vsel %vm1315, %v1314, 0.0
    %1506 = vadd.xlane.f32.xlu0 %v1505
    %v1507 = vpop.xlane.xlu0 %1506
    %v1508 = vld [vmem:[#allocation2] sm:$0x1]
    %v1510 = vlaneseq
    %v1511 = vshrl.u32 %v1510, 7
    %v1512 = vsub.s32 0, %v1511
    %v1513 = vrot.slane %v1508, %v1512
    %v1515 = vadd.f32 %v1318, %v1513
    %v1516 = vadd.f32 %v1321, %v1513
    %v1517 = vadd.f32 %v1324, %v1513
    %v1518 = vadd.f32 %v1327, %v1513
    %v1519 = vadd.f32 %v1330, %v1513
    %v1520 = vadd.f32 %v1333, %v1513
    %v1521 = vadd.f32 %v1336, %v1513
    %v1522 = vadd.f32 %v1339, %v1513
    %v1523 = vadd.f32 %v1342, %v1513
    %v1524 = vadd.f32 %v1345, %v1513
    %v1525 = vadd.f32 %v1348, %v1513
    %v1526 = vadd.f32 %v1351, %v1513
    %v1527 = vadd.f32 %v1354, %v1513
    %v1528 = vadd.f32 %v1357, %v1513
    %v1529 = vadd.f32 %v1360, %v1513
    %v1530 = vadd.f32 %v1363, %v1513
    %v1531 = vadd.f32 %v1366, %v1513
    %v1532 = vadd.f32 %v1369, %v1513
    %v1533 = vadd.f32 %v1372, %v1513
    %v1534 = vadd.f32 %v1375, %v1513
    %v1535 = vadd.f32 %v1378, %v1513
    %v1536 = vadd.f32 %v1381, %v1513
    %v1537 = vadd.f32 %v1384, %v1513
    %v1538 = vadd.f32 %v1387, %v1513
    %v1539 = vadd.f32 %v1390, %v1513
    %v1540 = vadd.f32 %v1393, %v1513
    %v1541 = vadd.f32 %v1396, %v1513
    %v1542 = vadd.f32 %v1399, %v1513
    %v1543 = vadd.f32 %v1402, %v1513
    %v1544 = vadd.f32 %v1405, %v1513
    %v1545 = vadd.f32 %v1408, %v1513
    %v1546 = vadd.f32 %v1411, %v1513
    %v1547 = vadd.f32 %v1414, %v1513
    %v1548 = vadd.f32 %v1417, %v1513
    %v1549 = vadd.f32 %v1420, %v1513
    %v1550 = vadd.f32 %v1423, %v1513
    %v1551 = vadd.f32 %v1426, %v1513
    %v1552 = vadd.f32 %v1429, %v1513
    %v1553 = vadd.f32 %v1432, %v1513
    %v1554 = vadd.f32 %v1435, %v1513
    %v1555 = vadd.f32 %v1438, %v1513
    %v1556 = vadd.f32 %v1441, %v1513
    %v1557 = vadd.f32 %v1444, %v1513
    %v1558 = vadd.f32 %v1447, %v1513
    %v1559 = vadd.f32 %v1450, %v1513
    %v1560 = vadd.f32 %v1453, %v1513
    %v1561 = vadd.f32 %v1456, %v1513
    %v1562 = vadd.f32 %v1459, %v1513
    %v1563 = vadd.f32 %v1462, %v1513
    %v1564 = vadd.f32 %v1465, %v1513
    %v1565 = vadd.f32 %v1468, %v1513
    %v1566 = vadd.f32 %v1471, %v1513
    %v1567 = vadd.f32 %v1474, %v1513
    %v1568 = vadd.f32 %v1477, %v1513
    %v1569 = vadd.f32 %v1480, %v1513
    %v1570 = vadd.f32 %v1483, %v1513
    %v1571 = vadd.f32 %v1486, %v1513
    %v1572 = vadd.f32 %v1489, %v1513
    %v1573 = vadd.f32 %v1492, %v1513
    %v1574 = vadd.f32 %v1495, %v1513
    %v1575 = vadd.f32 %v1498, %v1513
    %v1576 = vadd.f32 %v1501, %v1513
    %v1577 = vadd.f32 %v1504, %v1513
    %v1578 = vadd.f32 %v1507, %v1513
    %vm1579 = vcmask 7168
    %1580 = vst.msk [vmem:[%s7] sm:$0xff] %vm1579, %v1515
    %1581 = vst.msk [vmem:[%s7 + $0x8] sm:$0xff] %vm1579, %v1516
    %1582 = vst.msk [vmem:[%s7 + $0x10] sm:$0xff] %vm1579, %v1517
    %1583 = vst.msk [vmem:[%s7 + $0x18] sm:$0xff] %vm1579, %v1518
    %1584 = vst.msk [vmem:[%s7 + $0x20] sm:$0xff] %vm1579, %v1519
    %1585 = vst.msk [vmem:[%s7 + $0x28] sm:$0xff] %vm1579, %v1520
    %1586 = vst.msk [vmem:[%s7 + $0x30] sm:$0xff] %vm1579, %v1521
    %1587 = vst.msk [vmem:[%s7 + $0x38] sm:$0xff] %vm1579, %v1522
    %1588 = vst.msk [vmem:[%s7 + $0x40] sm:$0xff] %vm1579, %v1523
    %1589 = vst.msk [vmem:[%s7 + $0x48] sm:$0xff] %vm1579, %v1524
    %1590 = vst.msk [vmem:[%s7 + $0x50] sm:$0xff] %vm1579, %v1525
    %1591 = vst.msk [vmem:[%s7 + $0x58] sm:$0xff] %vm1579, %v1526
    %1592 = vst.msk [vmem:[%s7 + $0x60] sm:$0xff] %vm1579, %v1527
    %1593 = vst.msk [vmem:[%s7 + $0x68] sm:$0xff] %vm1579, %v1528
    %1594 = vst.msk [vmem:[%s7 + $0x70] sm:$0xff] %vm1579, %v1529
    %1595 = vst.msk [vmem:[%s7 + $0x78] sm:$0xff] %vm1579, %v1530
    %1596 = vst.msk [vmem:[%s7 + $0x80] sm:$0xff] %vm1579, %v1531
    %1597 = vst.msk [vmem:[%s7 + $0x88] sm:$0xff] %vm1579, %v1532
    %1598 = vst.msk [vmem:[%s7 + $0x90] sm:$0xff] %vm1579, %v1533
    %1599 = vst.msk [vmem:[%s7 + $0x98] sm:$0xff] %vm1579, %v1534
    %1600 = vst.msk [vmem:[%s7 + $0xa0] sm:$0xff] %vm1579, %v1535
    %1601 = vst.msk [vmem:[%s7 + $0xa8] sm:$0xff] %vm1579, %v1536
    %1602 = vst.msk [vmem:[%s7 + $0xb0] sm:$0xff] %vm1579, %v1537
    %1603 = vst.msk [vmem:[%s7 + $0xb8] sm:$0xff] %vm1579, %v1538
    %1604 = vst.msk [vmem:[%s7 + $0xc0] sm:$0xff] %vm1579, %v1539
    %1605 = vst.msk [vmem:[%s7 + $0xc8] sm:$0xff] %vm1579, %v1540
    %1606 = vst.msk [vmem:[%s7 + $0xd0] sm:$0xff] %vm1579, %v1541
    %1607 = vst.msk [vmem:[%s7 + $0xd8] sm:$0xff] %vm1579, %v1542
    %1608 = vst.msk [vmem:[%s7 + $0xe0] sm:$0xff] %vm1579, %v1543
    %1609 = vst.msk [vmem:[%s7 + $0xe8] sm:$0xff] %vm1579, %v1544
    %1610 = vst.msk [vmem:[%s7 + $0xf0] sm:$0xff] %vm1579, %v1545
    %1611 = vst.msk [vmem:[%s7 + $0xf8] sm:$0xff] %vm1579, %v1546
    %1612 = vst.msk [vmem:[%s7 + $0x100] sm:$0xff] %vm1579, %v1547
    %1613 = vst.msk [vmem:[%s7 + $0x108] sm:$0xff] %vm1579, %v1548
    %1614 = vst.msk [vmem:[%s7 + $0x110] sm:$0xff] %vm1579, %v1549
    %1615 = vst.msk [vmem:[%s7 + $0x118] sm:$0xff] %vm1579, %v1550
    %1616 = vst.msk [vmem:[%s7 + $0x120] sm:$0xff] %vm1579, %v1551
    %1617 = vst.msk [vmem:[%s7 + $0x128] sm:$0xff] %vm1579, %v1552
    %1618 = vst.msk [vmem:[%s7 + $0x130] sm:$0xff] %vm1579, %v1553
    %1619 = vst.msk [vmem:[%s7 + $0x138] sm:$0xff] %vm1579, %v1554
    %1620 = vst.msk [vmem:[%s7 + $0x140] sm:$0xff] %vm1579, %v1555
    %1621 = vst.msk [vmem:[%s7 + $0x148] sm:$0xff] %vm1579, %v1556
    %1622 = vst.msk [vmem:[%s7 + $0x150] sm:$0xff] %vm1579, %v1557
    %1623 = vst.msk [vmem:[%s7 + $0x158] sm:$0xff] %vm1579, %v1558
    %1624 = vst.msk [vmem:[%s7 + $0x160] sm:$0xff] %vm1579, %v1559
    %1625 = vst.msk [vmem:[%s7 + $0x168] sm:$0xff] %vm1579, %v1560
    %1626 = vst.msk [vmem:[%s7 + $0x170] sm:$0xff] %vm1579, %v1561
    %1627 = vst.msk [vmem:[%s7 + $0x178] sm:$0xff] %vm1579, %v1562
    %1628 = vst.msk [vmem:[%s7 + $0x180] sm:$0xff] %vm1579, %v1563
    %1629 = vst.msk [vmem:[%s7 + $0x188] sm:$0xff] %vm1579, %v1564
    %1630 = vst.msk [vmem:[%s7 + $0x190] sm:$0xff] %vm1579, %v1565
    %1631 = vst.msk [vmem:[%s7 + $0x198] sm:$0xff] %vm1579, %v1566
    %1632 = vst.msk [vmem:[%s7 + $0x1a0] sm:$0xff] %vm1579, %v1567
    %1633 = vst.msk [vmem:[%s7 + $0x1a8] sm:$0xff] %vm1579, %v1568
    %1634 = vst.msk [vmem:[%s7 + $0x1b0] sm:$0xff] %vm1579, %v1569
    %1635 = vst.msk [vmem:[%s7 + $0x1b8] sm:$0xff] %vm1579, %v1570
    %1636 = vst.msk [vmem:[%s7 + $0x1c0] sm:$0xff] %vm1579, %v1571
    %1637 = vst.msk [vmem:[%s7 + $0x1c8] sm:$0xff] %vm1579, %v1572
    %1638 = vst.msk [vmem:[%s7 + $0x1d0] sm:$0xff] %vm1579, %v1573
    %1639 = vst.msk [vmem:[%s7 + $0x1d8] sm:$0xff] %vm1579, %v1574
    %1640 = vst.msk [vmem:[%s7 + $0x1e0] sm:$0xff] %vm1579, %v1575
    %1641 = vst.msk [vmem:[%s7 + $0x1e8] sm:$0xff] %vm1579, %v1576
    %1642 = vst.msk [vmem:[%s7 + $0x1f0] sm:$0xff] %vm1579, %v1577
    %1643 = vst.msk [vmem:[%s7 + $0x1f8] sm:$0xff] %vm1579, %v1578
    // Predicated region
    $region34: #{tpu_custom_call.1} parent=1 // pred_check
      _
    $region35: #{tpu_custom_call.1} parent=1 // pred_check_branch
      %1645 = sbr.rel (0) target = $region37
    $region36: #{tpu_custom_call.1} parent=1 // pred_region
      _
    $region37: #{tpu_custom_call.1} parent=1 // pred_fallthru
      _
    // Predicated region
    $region38: #{tpu_custom_call.1} parent=1 // pred_check
      _
    $region39: #{tpu_custom_call.1} parent=1 // pred_check_branch
      %1647 = sbr.rel (0) target = $region41
    $region40: #{tpu_custom_call.1} parent=1 // pred_region
      _
    $region41: #{tpu_custom_call.1} parent=1 // pred_fallthru
      _
    %1648 = vsyncpa [#allocation4], 1

</llo_original>
